<compile_context>
chip_gen: v7x
topology: tpu7x:2x2x1
jax: 0.10.0
libtpu: 0.0.40
codegen_flags: <defaults>
</compile_context>

<pallas_src>
import functools
import math

import jax
import jax.numpy as jnp
from jax.experimental import pallas as pl
from jax.experimental.pallas import tpu as pltpu


def _round_up(v, m):
    return ((v + m - 1) // m) * m


# ---------------------------------------------------------------------------
# Fused Pallas kernel: implicit im2col (static tap-offset slices in VMEM)
#                      + bf16 GEMM with f32 accumulation + bias.
# One grid step = (sample n, L-tile t).  xa_ref is the main flat-input window
# for this tile and xb_ref is a small overlap window starting right after it,
# so every tap shift stays in-bounds and is a static slice of their
# (lane-aligned) concatenation.
# ---------------------------------------------------------------------------
def _upconv_kernel(xa_ref, xb_ref, w_ref, b_ref, o_ref, *,
                   tap_offsets, stride, tl):
    # xa_ref: (1, C, BIN)        compute_dtype (bf16)   main window
    # xb_ref: (1, C, OV)         compute_dtype (bf16)   overlap window
    # w_ref:  (kh*kw, OCp, C)    compute_dtype (bf16)
    # b_ref:  (OCp, 1)           f32
    # o_ref:  (1, OCp, TL)       f32
    out_ch_p = o_ref.shape[1]
    # Both windows have lane widths that are multiples of 128 -> cheap concat.
    xcat = jnp.concatenate([xa_ref[0], xb_ref[0]], axis=-1)     # (C, BIN+OV)
    w_all = w_ref[...]                                          # (taps, OCp, C)

    acc = jnp.zeros((out_ch_p, tl), jnp.float32)
    for k, off in enumerate(tap_offsets):        # static unroll over kh*kw taps
        if stride == 1:
            patch = xcat[:, off:off + tl]                       # (C, TL)
        else:
            # TODO(synk): conv stride > 1 path uses a static strided value
            # slice; it is not exercised by the default (stride=1) test.
            span = (tl - 1) * stride + 1
            patch = xcat[:, off:off + span:stride]              # (C, TL)
        acc = acc + jnp.dot(w_all[k], patch,
                            preferred_element_type=jnp.float32)

    o_ref[0] = (acc + b_ref[...]).astype(o_ref.dtype)


# ---------------------------------------------------------------------------
# Wrapper: upsample + pad + flatten in plain JAX, fused conv in Pallas.
# ---------------------------------------------------------------------------
@functools.partial(jax.jit, static_argnames=(
    "kernel_size", "stride", "padding", "dilation", "scale_factor",
    "tile_l", "compute_dtype"))
def upsample_conv_forward(x, weight, bias, *, kernel_size, stride, padding,
                          dilation, scale_factor, tile_l=512,
                          compute_dtype=jnp.bfloat16):
    N, C, H, W = x.shape
    out_ch = weight.shape[0]
    kh, kw = kernel_size
    s = scale_factor

    # 1) nearest-neighbour upsample + zero padding (bf16 to halve HBM bytes)
    x_up = jnp.repeat(jnp.repeat(x.astype(compute_dtype), s, axis=2), s, axis=3)
    x_pad = jnp.pad(x_up, ((0, 0), (0, 0), (padding, padding),
                           (padding, padding)))
    H_pad, W_pad = H * s + 2 * padding, W * s + 2 * padding
    H_out = (H_pad - dilation * (kh - 1) - 1) // stride + 1
    W_out = (W_pad - dilation * (kw - 1) - 1) // stride + 1

    # conv-tap offsets in row-major flattened (H_pad, W_pad) coordinates
    tap_offsets = tuple(i * dilation * W_pad + j * dilation
                        for i in range(kh) for j in range(kw))
    max_off = max(tap_offsets)

    # 2) "wide output" trick: compute H_out x W_pad columns so each tap is a
    #    pure offset of the flat input; junk columns are dropped at the end.
    #    OV: lane-aligned overlap big enough to cover the largest tap offset.
    ov = _round_up(max(max_off, 1), 128)
    tl = _round_up(max(tile_l, 128), ov)        # lane-dense, multiple of OV
    L_wide = H_out * W_pad
    nb = -(-L_wide // tl)                       # number of lane-dense L tiles
    bin_len = stride * tl                       # flat input elems per tile
    q = bin_len // ov                           # overlap-spec block multiplier

    Lf = H_pad * W_pad
    Lf_pad = max(Lf, nb * bin_len + ov)         # overlap of last tile exists
    xf = x_pad.reshape(N, C, Lf)
    xf = jnp.pad(xf, ((0, 0), (0, 0), (0, Lf_pad - Lf)))

    # 3) weights per tap, out_ch padded to a sublane multiple
    out_ch_p = _round_up(out_ch, 8)
    w_taps = jnp.transpose(weight, (2, 3, 0, 1)).reshape(kh * kw, out_ch, C)
    w_taps = jnp.pad(w_taps, ((0, 0), (0, out_ch_p - out_ch), (0, 0)))
    w_taps = w_taps.astype(compute_dtype)
    b_col = jnp.pad(bias.reshape(out_ch, 1).astype(jnp.float32),
                    ((0, out_ch_p - out_ch), (0, 0)))

    kernel = functools.partial(_upconv_kernel, tap_offsets=tap_offsets,
                               stride=stride, tl=tl)

    itm = jnp.dtype(compute_dtype).itemsize
    cost = pl.CostEstimate(
        flops=2 * N * out_ch_p * C * kh * kw * nb * tl,
        transcendentals=0,
        bytes_accessed=(N * nb * C * (bin_len + ov) * itm   # input + overlap
                        + kh * kw * out_ch_p * C * itm
                        + out_ch_p * 4
                        + N * out_ch_p * nb * tl * 4))

    # per-step VMEM (double-buffered + in-kernel temporaries) estimate;
    # raise the scoped limit if a large config needs it.
    block_bytes = (2 * C * (bin_len + ov) * itm          # double-buffered inputs
                   + 2 * out_ch_p * tl * 4               # double-buffered output
                   + kh * kw * out_ch_p * C * itm + out_ch_p * 4
                   + C * (bin_len + ov) * itm + out_ch_p * tl * 4)  # temporaries
    cparams = dict(dimension_semantics=("parallel", "parallel"))
    if block_bytes > 12 * 1024 * 1024:           # keep headroom on v7x (64 MiB)
        cparams["vmem_limit_bytes"] = min(4 * block_bytes, 64 * 1024 * 1024)

    out_wide = pl.pallas_call(
        kernel,
        out_shape=jax.ShapeDtypeStruct((N, out_ch_p, nb * tl), jnp.float32),
        grid_spec=pltpu.PrefetchScalarGridSpec(
            num_scalar_prefetch=0,
            grid=(N, nb),
            in_specs=[
                # main flat-input window for tile t
                pl.BlockSpec((1, C, bin_len), lambda n, t: (n, 0, t)),
                # small overlap window starting right after the main window
                pl.BlockSpec((1, C, ov), lambda n, t: (n, 0, (t + 1) * q)),
                pl.BlockSpec((kh * kw, out_ch_p, C), lambda n, t: (0, 0, 0)),
                pl.BlockSpec((out_ch_p, 1), lambda n, t: (0, 0)),
            ],
            out_specs=pl.BlockSpec((1, out_ch_p, tl), lambda n, t: (n, 0, t)),
        ),
        compiler_params=pltpu.CompilerParams(**cparams),
        cost_estimate=cost,
    )(xf, xf, w_taps, b_col)

    out = out_wide[:, :out_ch, :L_wide]
    out = out.reshape(N, out_ch, H_out, W_pad)[:, :, :, :W_out]
    return out


# ---------------------------------------------------------------------------
# The Upsampling module (forward only), matching the PyTorch reference.
# ---------------------------------------------------------------------------
class Upsampling:
    def __init__(self, in_channels, out_channels, kernel_size, dilation=1,
                 padding=0, stride=1, scale_factor=2, key=None):
        if not isinstance(scale_factor, int):
            raise TypeError("The scale_factor for nearest upsampling is "
                            "preferred to be int type")
        if isinstance(kernel_size, int):
            kernel_size = (kernel_size, kernel_size)
        elif not isinstance(kernel_size, tuple):
            raise TypeError("The kernel_size should be either tuple or int type")
        self.in_ch = in_channels
        self.out_ch = out_channels
        self.k_size = kernel_size
        self.stride = stride
        self.padding = padding
        self.dilation = dilation
        self.scale_fc = scale_factor

        bound = 1.0 / math.sqrt(self.in_ch * self.k_size[0] * self.k_size[1])
        if key is None:
            key = jax.random.PRNGKey(0)
        kw_, kb_ = jax.random.split(key)
        self.weight = jax.random.uniform(
            kw_, (self.out_ch, self.in_ch, self.k_size[0], self.k_size[1]),
            dtype=jnp.float32, minval=-bound, maxval=bound)
        self.bias = jax.random.uniform(
            kb_, (self.out_ch,), dtype=jnp.float32, minval=-bound, maxval=bound)

    def forward(self, x):
        if x.shape[1] != self.in_ch:
            raise ValueError("The channel for input data does not match the "
                             "in_channels of the Upsampling module")
        return upsample_conv_forward(
            x, self.weight, self.bias,
            kernel_size=self.k_size, stride=self.stride, padding=self.padding,
            dilation=self.dilation, scale_factor=self.scale_fc)


# ---------------------------------------------------------------------------
# Reference helpers (plain JAX, used only for the correctness check)
# ---------------------------------------------------------------------------
def _im2col_ref(x, kh, kw, stride, dilation, padding):
    """torch.nn.functional.unfold semantics: output (N, C*kh*kw, L)."""
    N, C, H, W = x.shape
    x_p = jnp.pad(x, ((0, 0), (0, 0), (padding, padding), (padding, padding)))
    H_out = (H + 2 * padding - dilation * (kh - 1) - 1) // stride + 1
    W_out = (W + 2 * padding - dilation * (kw - 1) - 1) // stride + 1
    cols = []
    for c in range(C):
        for i in range(kh):
            for j in range(kw):
                patch = x_p[
                    :, c,
                    i * dilation: i * dilation + stride * H_out: stride,
                    j * dilation: j * dilation + stride * W_out: stride]
                cols.append(patch.reshape(N, -1))
    return jnp.stack(cols, axis=1), H_out, W_out


if __name__ == "__main__":
    key = jax.random.PRNGKey(0)
    k_in, k_mod = jax.random.split(key)

    N, C_in, H, W = 2, 4, 16, 16
    C_out, k_size, scale = 4, 3, 2

    x = jax.random.normal(k_in, (N, C_in, H, W), dtype=jnp.float32)
    mod = Upsampling(C_in, C_out, k_size, dilation=1, padding=0,
                     stride=1, scale_factor=scale, key=k_mod)
    out = jax.block_until_ready(mod.forward(x))

    # pure-JAX reference with the same bf16 operands and f32 accumulation
    x_up = jnp.repeat(jnp.repeat(x, scale, axis=2), scale, axis=3)
    u, H_out, W_out = _im2col_ref(x_up.astype(jnp.bfloat16),
                                  k_size, k_size, 1, 1, 0)
    ref = jnp.einsum("ok,nkl->nol",
                     mod.weight.reshape(C_out, -1).astype(jnp.bfloat16), u,
                     preferred_element_type=jnp.float32)
    ref = (ref + mod.bias.reshape(1, -1, 1)).reshape(N, C_out, H_out, W_out)

    assert out.shape == (N, C_out,
                         H * scale - (k_size - 1), W * scale - (k_size - 1))
    err = float(jnp.max(jnp.abs(out - ref)))
    assert jnp.allclose(out, ref, atol=1e-3, rtol=1e-3), err
    print("KERNEL_OK")
</pallas_src>

<mosaic_0001>
module attributes {stable_mosaic.version = 11 : i64} {
  func.func @_upconv_kernel(%arg0: i32, %arg1: i32, %arg2: memref<1x4x512xbf16, #tpu.memory_space<vmem>>, %arg3: memref<1x4x128xbf16, #tpu.memory_space<vmem>>, %arg4: memref<9x8x4xbf16, #tpu.memory_space<vmem>>, %arg5: memref<8x1xf32, #tpu.memory_space<vmem>>, %arg6: memref<1x8x512xf32, #tpu.memory_space<vmem>>) attributes {dimension_semantics = [#tpu.dimension_semantics<parallel>, #tpu.dimension_semantics<parallel>], iteration_bounds = array<i64: 2, 2>, scalar_prefetch = 0 : i64, scratch_operands = 0 : i64, tpu.core_type = #tpu.core_type<tc>, window_params = [{transform_indices = @transform_0, window_bounds = array<i64: 1, 4, 512>}, {transform_indices = @transform_1, window_bounds = array<i64: 1, 4, 128>}, {pipeline_mode = #tpu.pipeline_mode<synchronous>, transform_indices = @transform_2, window_bounds = array<i64: 9, 8, 4>}, {pipeline_mode = #tpu.pipeline_mode<synchronous>, transform_indices = @transform_3, window_bounds = array<i64: 8, 1>}, {transform_indices = @transform_4, window_bounds = array<i64: 1, 8, 512>}]} {
    %c0 = arith.constant 0 : index
    %c0_0 = arith.constant 0 : index
    %c0_1 = arith.constant 0 : index
    %0 = vector.load %arg2[%c0, %c0_0, %c0_1] : memref<1x4x512xbf16, #tpu.memory_space<vmem>>, vector<1x4x512xbf16>
    %1 = vector.shape_cast %0 : vector<1x4x512xbf16> to vector<4x512xbf16>
    %c0_2 = arith.constant 0 : index
    %c0_3 = arith.constant 0 : index
    %c0_4 = arith.constant 0 : index
    %2 = vector.load %arg3[%c0_2, %c0_3, %c0_4] : memref<1x4x128xbf16, #tpu.memory_space<vmem>>, vector<1x4x128xbf16>
    %3 = vector.shape_cast %2 : vector<1x4x128xbf16> to vector<4x128xbf16>
    %4 = tpu.concatenate %1, %3 in 1 : vector<4x512xbf16>, vector<4x128xbf16> -> vector<4x640xbf16>
    %c0_5 = arith.constant 0 : index
    %c0_6 = arith.constant 0 : index
    %c0_7 = arith.constant 0 : index
    %5 = vector.load %arg4[%c0_5, %c0_6, %c0_7] : memref<9x8x4xbf16, #tpu.memory_space<vmem>>, vector<9x8x4xbf16>
    %cst = arith.constant 0.000000e+00 : f32
    %6 = vector.broadcast %cst : f32 to vector<8x512xf32>
    %7 = vector.extract_strided_slice %4 {offsets = [0, 0], sizes = [4, 512], strides = [1, 1]} : vector<4x640xbf16> to vector<4x512xbf16>
    %8 = vector.extract_strided_slice %5 {offsets = [0, 0, 0], sizes = [1, 8, 4], strides = [1, 1, 1]} : vector<9x8x4xbf16> to vector<1x8x4xbf16>
    %9 = vector.shape_cast %8 : vector<1x8x4xbf16> to vector<8x4xbf16>
    %cst_8 = arith.constant dense<0.000000e+00> : vector<8x512xf32>
    %10 = tpu.matmul %9, %7, %cst_8 {dimension_numbers = #tpu.dot_dimension_numbers<[1], [0], [0], [1], [0, 0, 1, 1], [], []>} : vector<8x4xbf16>, vector<4x512xbf16>, vector<8x512xf32> -> vector<8x512xf32>
    %11 = arith.addf %6, %10 : vector<8x512xf32>
    %12 = vector.extract_strided_slice %4 {offsets = [0, 1], sizes = [4, 512], strides = [1, 1]} : vector<4x640xbf16> to vector<4x512xbf16>
    %13 = vector.extract_strided_slice %5 {offsets = [1, 0, 0], sizes = [1, 8, 4], strides = [1, 1, 1]} : vector<9x8x4xbf16> to vector<1x8x4xbf16>
    %14 = vector.shape_cast %13 : vector<1x8x4xbf16> to vector<8x4xbf16>
    %cst_9 = arith.constant dense<0.000000e+00> : vector<8x512xf32>
    %15 = tpu.matmul %14, %12, %cst_9 {dimension_numbers = #tpu.dot_dimension_numbers<[1], [0], [0], [1], [0, 0, 1, 1], [], []>} : vector<8x4xbf16>, vector<4x512xbf16>, vector<8x512xf32> -> vector<8x512xf32>
    %16 = arith.addf %11, %15 : vector<8x512xf32>
    %17 = vector.extract_strided_slice %4 {offsets = [0, 2], sizes = [4, 512], strides = [1, 1]} : vector<4x640xbf16> to vector<4x512xbf16>
    %18 = vector.extract_strided_slice %5 {offsets = [2, 0, 0], sizes = [1, 8, 4], strides = [1, 1, 1]} : vector<9x8x4xbf16> to vector<1x8x4xbf16>
    %19 = vector.shape_cast %18 : vector<1x8x4xbf16> to vector<8x4xbf16>
    %cst_10 = arith.constant dense<0.000000e+00> : vector<8x512xf32>
    %20 = tpu.matmul %19, %17, %cst_10 {dimension_numbers = #tpu.dot_dimension_numbers<[1], [0], [0], [1], [0, 0, 1, 1], [], []>} : vector<8x4xbf16>, vector<4x512xbf16>, vector<8x512xf32> -> vector<8x512xf32>
    %21 = arith.addf %16, %20 : vector<8x512xf32>
    %22 = vector.extract_strided_slice %4 {offsets = [0, 32], sizes = [4, 512], strides = [1, 1]} : vector<4x640xbf16> to vector<4x512xbf16>
    %23 = vector.extract_strided_slice %5 {offsets = [3, 0, 0], sizes = [1, 8, 4], strides = [1, 1, 1]} : vector<9x8x4xbf16> to vector<1x8x4xbf16>
    %24 = vector.shape_cast %23 : vector<1x8x4xbf16> to vector<8x4xbf16>
    %cst_11 = arith.constant dense<0.000000e+00> : vector<8x512xf32>
    %25 = tpu.matmul %24, %22, %cst_11 {dimension_numbers = #tpu.dot_dimension_numbers<[1], [0], [0], [1], [0, 0, 1, 1], [], []>} : vector<8x4xbf16>, vector<4x512xbf16>, vector<8x512xf32> -> vector<8x512xf32>
    %26 = arith.addf %21, %25 : vector<8x512xf32>
    %27 = vector.extract_strided_slice %4 {offsets = [0, 33], sizes = [4, 512], strides = [1, 1]} : vector<4x640xbf16> to vector<4x512xbf16>
    %28 = vector.extract_strided_slice %5 {offsets = [4, 0, 0], sizes = [1, 8, 4], strides = [1, 1, 1]} : vector<9x8x4xbf16> to vector<1x8x4xbf16>
    %29 = vector.shape_cast %28 : vector<1x8x4xbf16> to vector<8x4xbf16>
    %cst_12 = arith.constant dense<0.000000e+00> : vector<8x512xf32>
    %30 = tpu.matmul %29, %27, %cst_12 {dimension_numbers = #tpu.dot_dimension_numbers<[1], [0], [0], [1], [0, 0, 1, 1], [], []>} : vector<8x4xbf16>, vector<4x512xbf16>, vector<8x512xf32> -> vector<8x512xf32>
    %31 = arith.addf %26, %30 : vector<8x512xf32>
    %32 = vector.extract_strided_slice %4 {offsets = [0, 34], sizes = [4, 512], strides = [1, 1]} : vector<4x640xbf16> to vector<4x512xbf16>
    %33 = vector.extract_strided_slice %5 {offsets = [5, 0, 0], sizes = [1, 8, 4], strides = [1, 1, 1]} : vector<9x8x4xbf16> to vector<1x8x4xbf16>
    %34 = vector.shape_cast %33 : vector<1x8x4xbf16> to vector<8x4xbf16>
    %cst_13 = arith.constant dense<0.000000e+00> : vector<8x512xf32>
    %35 = tpu.matmul %34, %32, %cst_13 {dimension_numbers = #tpu.dot_dimension_numbers<[1], [0], [0], [1], [0, 0, 1, 1], [], []>} : vector<8x4xbf16>, vector<4x512xbf16>, vector<8x512xf32> -> vector<8x512xf32>
    %36 = arith.addf %31, %35 : vector<8x512xf32>
    %37 = vector.extract_strided_slice %4 {offsets = [0, 64], sizes = [4, 512], strides = [1, 1]} : vector<4x640xbf16> to vector<4x512xbf16>
    %38 = vector.extract_strided_slice %5 {offsets = [6, 0, 0], sizes = [1, 8, 4], strides = [1, 1, 1]} : vector<9x8x4xbf16> to vector<1x8x4xbf16>
    %39 = vector.shape_cast %38 : vector<1x8x4xbf16> to vector<8x4xbf16>
    %cst_14 = arith.constant dense<0.000000e+00> : vector<8x512xf32>
    %40 = tpu.matmul %39, %37, %cst_14 {dimension_numbers = #tpu.dot_dimension_numbers<[1], [0], [0], [1], [0, 0, 1, 1], [], []>} : vector<8x4xbf16>, vector<4x512xbf16>, vector<8x512xf32> -> vector<8x512xf32>
    %41 = arith.addf %36, %40 : vector<8x512xf32>
    %42 = vector.extract_strided_slice %4 {offsets = [0, 65], sizes = [4, 512], strides = [1, 1]} : vector<4x640xbf16> to vector<4x512xbf16>
    %43 = vector.extract_strided_slice %5 {offsets = [7, 0, 0], sizes = [1, 8, 4], strides = [1, 1, 1]} : vector<9x8x4xbf16> to vector<1x8x4xbf16>
    %44 = vector.shape_cast %43 : vector<1x8x4xbf16> to vector<8x4xbf16>
    %cst_15 = arith.constant dense<0.000000e+00> : vector<8x512xf32>
    %45 = tpu.matmul %44, %42, %cst_15 {dimension_numbers = #tpu.dot_dimension_numbers<[1], [0], [0], [1], [0, 0, 1, 1], [], []>} : vector<8x4xbf16>, vector<4x512xbf16>, vector<8x512xf32> -> vector<8x512xf32>
    %46 = arith.addf %41, %45 : vector<8x512xf32>
    %47 = vector.extract_strided_slice %4 {offsets = [0, 66], sizes = [4, 512], strides = [1, 1]} : vector<4x640xbf16> to vector<4x512xbf16>
    %48 = vector.extract_strided_slice %5 {offsets = [8, 0, 0], sizes = [1, 8, 4], strides = [1, 1, 1]} : vector<9x8x4xbf16> to vector<1x8x4xbf16>
    %49 = vector.shape_cast %48 : vector<1x8x4xbf16> to vector<8x4xbf16>
    %cst_16 = arith.constant dense<0.000000e+00> : vector<8x512xf32>
    %50 = tpu.matmul %49, %47, %cst_16 {dimension_numbers = #tpu.dot_dimension_numbers<[1], [0], [0], [1], [0, 0, 1, 1], [], []>} : vector<8x4xbf16>, vector<4x512xbf16>, vector<8x512xf32> -> vector<8x512xf32>
    %51 = arith.addf %46, %50 : vector<8x512xf32>
    %c0_17 = arith.constant 0 : index
    %c0_18 = arith.constant 0 : index
    %52 = vector.load %arg5[%c0_17, %c0_18] : memref<8x1xf32, #tpu.memory_space<vmem>>, vector<8x1xf32>
    %53 = vector.broadcast %52 : vector<8x1xf32> to vector<8x512xf32>
    %54 = arith.addf %51, %53 : vector<8x512xf32>
    %c0_19 = arith.constant 0 : index
    %c0_20 = arith.constant 0 : index
    %c0_21 = arith.constant 0 : index
    %55 = vector.load %arg6[%c0_19, %c0_20, %c0_21] : memref<1x8x512xf32, #tpu.memory_space<vmem>>, vector<1x8x512xf32>
    %56 = vector.shape_cast %55 : vector<1x8x512xf32> to vector<8x512xf32>
    %57 = vector.shape_cast %54 : vector<8x512xf32> to vector<1x8x512xf32>
    tpu.vector_store %arg6[%c0_19, %c0_20, %c0_21], %57 {strides = array<i32>} : memref<1x8x512xf32, #tpu.memory_space<vmem>>, vector<1x8x512xf32>,
    return
  }
  func.func @transform_0(%arg0: i32, %arg1: i32) -> (i32, i32, i32) {
    %c0_i32 = arith.constant 0 : i32
    %c0_i32_0 = arith.constant 0 : i32
    return %arg0, %c0_i32, %arg1 : i32, i32, i32
  }
  func.func @transform_1(%arg0: i32, %arg1: i32) -> (i32, i32, i32) {
    %c1_i32 = arith.constant 1 : i32
    %0 = arith.addi %arg1, %c1_i32 : i32
    %c4_i32 = arith.constant 4 : i32
    %1 = arith.muli %0, %c4_i32 : i32
    %c0_i32 = arith.constant 0 : i32
    %c0_i32_0 = arith.constant 0 : i32
    return %arg0, %c0_i32, %1 : i32, i32, i32
  }
  func.func @transform_2(%arg0: i32, %arg1: i32) -> (i32, i32, i32) {
    %c0_i32 = arith.constant 0 : i32
    %c0_i32_0 = arith.constant 0 : i32
    %c0_i32_1 = arith.constant 0 : i32
    %c0_i32_2 = arith.constant 0 : i32
    return %c0_i32, %c0_i32_0, %c0_i32_1 : i32, i32, i32
  }
  func.func @transform_3(%arg0: i32, %arg1: i32) -> (i32, i32) {
    %c0_i32 = arith.constant 0 : i32
    %c0_i32_0 = arith.constant 0 : i32
    %c0_i32_1 = arith.constant 0 : i32
    return %c0_i32, %c0_i32_0 : i32, i32
  }
  func.func @transform_4(%arg0: i32, %arg1: i32) -> (i32, i32, i32) {
    %c0_i32 = arith.constant 0 : i32
    %c0_i32_0 = arith.constant 0 : i32
    return %arg0, %c0_i32, %arg1 : i32, i32, i32
  }
}

</mosaic_0001>

<llo_original>
// kernel: upsample_conv_forward.1
$region0: #{upsample_conv_forward.1}
  #allocation0 [shape = 'u32[]', space=smem, size = 0x4, offset = 0x4, fixed_abs, tag = 'smem constant byte address 0x4 - core index']
  #allocation1 [shape = 'u32[144,128]{1,0:T(1,128)}', space=vmem, size = 0x12000, scoped, tag = 'internal scratch']
  %s0 = inlined_call_operand.vmem [shape: bf16[2,4,1152], index: 0, kind: input, shape index: {}, may-alias: {0,1}]
  %s1 = inlined_call_operand.vmem [shape: bf16[2,4,1152], index: 1, kind: input, shape index: {}, may-alias: {0,1}]
  %s2 = inlined_call_operand.vmem [shape: bf16[9,8,4], index: 2, kind: input, shape index: {}]
  %s3 = inlined_call_operand.vmem [shape: f32[8,1], index: 3, kind: input, shape index: {}]
  %s4 = inlined_call_operand.vmem [shape: f32[2,8,1024], index: 4, kind: output, shape index: {}]
  %s5 = sld [smem:[#allocation0]]
  $region49: #{upsample_conv_forward.1} parent=0
    _
  %s7 = ssub.s32 1, %s5
  %s8 = scalar_select 0, %s7, %s5
  loop: start=0, step=1, limit=6
  $region2: #{upsample_conv_forward.1} parent=0 // loop_pre_header
    _
  $region3: #{upsample_conv_forward.1} parent=0 // loop_header
    %s10 = sphi 0, %s14
    %p11 = scmp.ge.s32.totalorder %s10, 6
    %s17 = sphi 0, %s29
    %s18 = sphi 0, %s25
    %s19 = sphi 0, %s17
    %s20 = sphi 0, %s18
    %s21 = sphi 0, %s19
    %s22 = sphi 0, %s20
    %s34 = sphi 0, %s36
    %s37 = sphi 0, %s34
    %s38 = sphi 0, %s37
    %s54 = sphi 0, %s38
    %s66 = sphi 0, %s68
    %s69 = sphi 0, %s66
    %s70 = sphi 0, %s69
    %s86 = sphi 0, %s70
    %s90 = sphi 0, %s90
    %s92 = sphi 0, %s90
    %s93 = sphi 0, %s92
    %s107 = sphi 0, %s93
    %s111 = sphi 0, %s111
    %s113 = sphi 0, %s111
    %s114 = sphi 0, %s113
    %s128 = sphi 0, %s114
    %s136 = sphi 0, %s138
    %s139 = sphi 0, %s136
    %s140 = sphi 0, %s139
    %s156 = sphi 0, %s140
  $region4: #{upsample_conv_forward.1} parent=0 // loop_header_branch
    %13 = sbr.rel (%p11) target = $region8
  $region5: #{upsample_conv_forward.1} parent=0 // loop_body
    %s15 = ssub.s32 %s10, 1
    %s16 = ssub.s32 %s10, 2
    %s23 = sadd.s32 1, %s18
    %p24 = scmp.ge.s32.totalorder %s23, 2
    %s25 = scalar_select %p24, 0, %s23
    %s26 = sadd.s32 1, %s17
    %s27 = scalar_select %p24, %s26, %s17
    %p28 = scmp.ge.s32.totalorder %s27, 2
    %s29 = scalar_select %p28, 0, %s27
    %s30 = ssub.s32 %s17, %s29
    %s31 = ssub.s32 %s18, %s25
    %s32 = sor.u32 %s30, %s31
    %p33 = scmp.eq.s32.totalorder %s32, 0
    %s35 = sadd.s32 %s34, 1
    %s36 = scalar_select %p33, %s34, %s35
    %p39 = pneg %p33
    %p40 = scmp.eq.s32.totalorder %s10, 3
    %p41 = por %p39, %p40
    %p42 = scmp.ne.s32.totalorder %s34, %s37
    %p43 = scmp.eq.s32.totalorder %s10, 0
    %p44 = por %p42, %p43
    %p45 = scmp.ne.s32.totalorder %s34, %s37
    %p46 = scmp.eq.s32.totalorder %s15, 3
    %p47 = por %p45, %p46
    %p48 = scmp.ne.s32.totalorder %s37, %s38
    %p49 = scmp.eq.s32.totalorder %s15, 0
    %p50 = por %p48, %p49
    %p51 = scmp.ne.s32.totalorder %s37, %s38
    %p52 = scmp.eq.s32.totalorder %s16, 3
    %p53 = por %p51, %p52
    %p55 = scmp.ne.s32.totalorder %s38, %s54
    %p56 = scmp.eq.s32.totalorder %s16, 0
    %p57 = por %p55, %p56
    %s58 = sadd.s32 %s18, 1
    %s59 = smul.u32 %s58, 4
    %s60 = sadd.s32 %s25, 1
    %s61 = smul.u32 %s60, 4
    %s62 = ssub.s32 %s17, %s29
    %s63 = ssub.s32 %s59, %s61
    %s64 = sor.u32 %s62, %s63
    %p65 = scmp.eq.s32.totalorder %s64, 0
    %s67 = sadd.s32 %s66, 1
    %s68 = scalar_select %p65, %s66, %s67
    %p71 = pneg %p65
    %p72 = scmp.eq.s32.totalorder %s10, 3
    %p73 = por %p71, %p72
    %p74 = scmp.ne.s32.totalorder %s66, %s69
    %p75 = scmp.eq.s32.totalorder %s10, 0
    %p76 = por %p74, %p75
    %p77 = scmp.ne.s32.totalorder %s66, %s69
    %p78 = scmp.eq.s32.totalorder %s15, 3
    %p79 = por %p77, %p78
    %p80 = scmp.ne.s32.totalorder %s69, %s70
    %p81 = scmp.eq.s32.totalorder %s15, 0
    %p82 = por %p80, %p81
    %p83 = scmp.ne.s32.totalorder %s69, %s70
    %p84 = scmp.eq.s32.totalorder %s16, 3
    %p85 = por %p83, %p84
    %p87 = scmp.ne.s32.totalorder %s70, %s86
    %p88 = scmp.eq.s32.totalorder %s16, 0
    %p89 = por %p87, %p88
    %s91 = sadd.s32 %s90, 1
    %p94 = scmp.eq.s32.totalorder %s10, 3
    %p95 = scmp.ne.s32.totalorder %s90, %s92
    %p96 = scmp.eq.s32.totalorder %s10, 0
    %p97 = por %p95, %p96
    %p98 = scmp.ne.s32.totalorder %s90, %s92
    %p99 = scmp.eq.s32.totalorder %s15, 3
    %p100 = por %p98, %p99
    %p101 = scmp.ne.s32.totalorder %s92, %s93
    %p102 = scmp.eq.s32.totalorder %s15, 0
    %p103 = por %p101, %p102
    %p104 = scmp.ne.s32.totalorder %s92, %s93
    %p105 = scmp.eq.s32.totalorder %s16, 3
    %p106 = por %p104, %p105
    %p108 = scmp.ne.s32.totalorder %s93, %s107
    %p109 = scmp.eq.s32.totalorder %s16, 0
    %p110 = por %p108, %p109
    %s112 = sadd.s32 %s111, 1
    %p115 = scmp.eq.s32.totalorder %s10, 3
    %p116 = scmp.ne.s32.totalorder %s111, %s113
    %p117 = scmp.eq.s32.totalorder %s10, 0
    %p118 = por %p116, %p117
    %p119 = scmp.ne.s32.totalorder %s111, %s113
    %p120 = scmp.eq.s32.totalorder %s15, 3
    %p121 = por %p119, %p120
    %p122 = scmp.ne.s32.totalorder %s113, %s114
    %p123 = scmp.eq.s32.totalorder %s15, 0
    %p124 = por %p122, %p123
    %p125 = scmp.ne.s32.totalorder %s113, %s114
    %p126 = scmp.eq.s32.totalorder %s16, 3
    %p127 = por %p125, %p126
    %p129 = scmp.ne.s32.totalorder %s114, %s128
    %p130 = scmp.eq.s32.totalorder %s16, 0
    %p131 = por %p129, %p130
    %s132 = ssub.s32 %s17, %s29
    %s133 = ssub.s32 %s18, %s25
    %s134 = sor.u32 %s132, %s133
    %p135 = scmp.eq.s32.totalorder %s134, 0
    %s137 = sadd.s32 %s136, 1
    %s138 = scalar_select %p135, %s136, %s137
    %p141 = pneg %p135
    %p142 = scmp.eq.s32.totalorder %s10, 3
    %p143 = por %p141, %p142
    %p144 = scmp.ne.s32.totalorder %s136, %s139
    %p145 = scmp.eq.s32.totalorder %s10, 0
    %p146 = por %p144, %p145
    %p147 = scmp.ne.s32.totalorder %s136, %s139
    %p148 = scmp.eq.s32.totalorder %s15, 3
    %p149 = por %p147, %p148
    %p150 = scmp.ne.s32.totalorder %s139, %s140
    %p151 = scmp.eq.s32.totalorder %s15, 0
    %p152 = por %p150, %p151
    %p153 = scmp.ne.s32.totalorder %s139, %s140
    %p154 = scmp.eq.s32.totalorder %s16, 3
    %p155 = por %p153, %p154
    %p157 = scmp.ne.s32.totalorder %s140, %s156
    %p158 = scmp.eq.s32.totalorder %s16, 0
    %p159 = por %p157, %p158
    %p160 = scmp.le.s32.totalorder 1, %s10
    %p161 = scmp.lt.s32.totalorder %s10, 5
    %p162 = pnand %p160, %p161
    %p163 = pneg %p162
    // Predicated region
    $region9: #{upsample_conv_forward.1} parent=5 // pred_check
      _
    $region10: #{upsample_conv_forward.1} parent=5 // pred_check_branch
      %165 = sbr.rel (%p162) target = $region12
    $region11: #{upsample_conv_forward.1} parent=5 // pred_region
      %s166 = ssub.s32 %s10, 1
      // Predicated region
      $region13: #{upsample_conv_forward.1} parent=11 // pred_check
        %p167 = pneg %p103
      $region14: #{upsample_conv_forward.1} parent=11 // pred_check_branch
        %169 = sbr.rel (%p167) target = $region16
      $region15: #{upsample_conv_forward.1} parent=11 // pred_region
        _
      $region16: #{upsample_conv_forward.1} parent=11 // pred_fallthru
        _
      // Predicated region
      $region17: #{upsample_conv_forward.1} parent=11 // pred_check
        %p170 = pneg %p124
      $region18: #{upsample_conv_forward.1} parent=11 // pred_check_branch
        %172 = sbr.rel (%p170) target = $region20
      $region19: #{upsample_conv_forward.1} parent=11 // pred_region
        _
      $region20: #{upsample_conv_forward.1} parent=11 // pred_fallthru
        _
    $region12: #{upsample_conv_forward.1} parent=5 // pred_fallthru
      _
    %p173 = scmp.lt.s32.totalorder %s10, 4
    // Predicated region
    $region21: #{upsample_conv_forward.1} parent=5 // pred_check
      %p174 = pneg %p173
    $region22: #{upsample_conv_forward.1} parent=5 // pred_check_branch
      %176 = sbr.rel (%p174) target = $region24
    $region23: #{upsample_conv_forward.1} parent=5 // pred_region
      // Predicated region
      $region25: #{upsample_conv_forward.1} parent=23 // pred_check
        %p177 = pneg %p44
      $region26: #{upsample_conv_forward.1} parent=23 // pred_check_branch
        %179 = sbr.rel (%p177) target = $region28
      $region27: #{upsample_conv_forward.1} parent=23 // pred_region
        %s180 = smul.u32 4, %s18
        %s181 = ssub.s32 9, %s180
        %p182 = scmp.lt.s32.totalorder %s181, 4
        %s183 = scalar_select %p182, %s181, 4
        %s184 = smul.u32 32, %s183
        %p185 = scmp.lt.s32.totalorder %s17, 1
        %s186 = scalar_select %p185, %s17, 1
        %p187 = scmp.lt.s32.totalorder %s180, 8
        %s188 = scalar_select %p187, %s180, 8
        %s189 = smul.addr %s186, 9
        %s190 = sadd.s32 %s188, %s189
        %s191 = smul.addr %s190, 2
        %s192 = scalar_lea.vmem %s0, %s191
        %s193 = smul.u32 4, %s18
        %s194 = ssub.s32 9, %s193
        %p195 = scmp.lt.s32.totalorder %s194, 4
        %s196 = scalar_select %p195, %s194, 4
        %s197 = smul.u32 32, %s196
      $region28: #{upsample_conv_forward.1} parent=23 // pred_fallthru
        _
      // Predicated region
      $region29: #{upsample_conv_forward.1} parent=23 // pred_check
        %p198 = pneg %p76
      $region30: #{upsample_conv_forward.1} parent=23 // pred_check_branch
        %200 = sbr.rel (%p198) target = $region32
      $region31: #{upsample_conv_forward.1} parent=23 // pred_region
        %s201 = sadd.s32 %s18, 1
        %s202 = smul.u32 %s201, 4
        %p203 = scmp.lt.s32.totalorder %s17, 1
        %s204 = scalar_select %p203, %s17, 1
        %p205 = scmp.lt.s32.totalorder %s202, 8
        %s206 = scalar_select %p205, %s202, 8
        %s207 = smul.addr %s204, 9
        %s208 = sadd.s32 %s206, %s207
        %s209 = smul.addr %s208, 2
        %s210 = scalar_lea.vmem %s1, %s209
        %s211 = sadd.s32 %s18, 1
        %s212 = smul.u32 %s211, 4
      $region32: #{upsample_conv_forward.1} parent=23 // pred_fallthru
        _
    $region24: #{upsample_conv_forward.1} parent=5 // pred_fallthru
      _
    %p213 = scmp.le.s32.totalorder 1, %s10
    %p214 = scmp.lt.s32.totalorder %s10, 5
    %p215 = pnand %p213, %p214
    %p216 = pneg %p215
    // Predicated region
    $region33: #{upsample_conv_forward.1} parent=5 // pred_check
      _
    $region34: #{upsample_conv_forward.1} parent=5 // pred_check_branch
      %218 = sbr.rel (%p215) target = $region36
    $region35: #{upsample_conv_forward.1} parent=5 // pred_region
      %s219 = ssub.s32 %s10, 1
      %s220 = smul.u32 4, %s20
      %s221 = ssub.s32 9, %s220
      %p222 = scmp.lt.s32.totalorder %s221, 4
      %s223 = scalar_select %p222, %s221, 4
      %s224 = smul.u32 32, %s223
      %p225 = scmp.lt.s32.totalorder %s19, 1
      %s226 = scalar_select %p225, %s19, 1
      %p227 = scmp.lt.s32.totalorder %s220, 8
      %s228 = scalar_select %p227, %s220, 8
      %s229 = smul.addr %s226, 9
      %s230 = sadd.s32 %s228, %s229
      %s231 = smul.addr %s230, 2
      %s232 = scalar_lea.vmem %s0, %s231
      %p233 = pneg %p50
      %p234 = pneg %p47
      %s235 = sadd.s32 %s20, 1
      %s236 = smul.u32 %s235, 4
      %p237 = scmp.lt.s32.totalorder %s19, 1
      %s238 = scalar_select %p237, %s19, 1
      %p239 = scmp.lt.s32.totalorder %s236, 8
      %s240 = scalar_select %p239, %s236, 8
      %s241 = smul.addr %s238, 9
      %s242 = sadd.s32 %s240, %s241
      %s243 = smul.addr %s242, 2
      %s244 = scalar_lea.vmem %s1, %s243
      %p245 = pneg %p82
      %p246 = pneg %p79
      %p247 = pneg %p103
      %p248 = pneg %p100
      %p249 = pneg %p124
      %p250 = pneg %p121
      %p251 = pneg %p152
      %p252 = pneg %p149
      %s253 = smul.u32 4, %s20
      %p254 = scmp.lt.s32.totalorder %s19, 1
      %s255 = scalar_select %p254, %s19, 1
      %p256 = scmp.lt.s32.totalorder %s253, 7
      %s257 = scalar_select %p256, %s253, 7
      %s258 = smul.addr %s255, 8
      %s259 = sadd.s32 %s257, %s258
      %s260 = smul.addr %s259, 8
      %s261 = scalar_lea.vmem %s4, %s260
      %s262 = smul.u32 4, %s20
      %s263 = ssub.s32 9, %s262
      %p264 = scmp.lt.s32.totalorder %s263, 4
      %s265 = scalar_select %p264, %s263, 4
      %s266 = smul.u32 32, %s265
      %p267 = scmp.lt.s32.totalorder %s19, 1
      %s268 = scalar_select %p267, %s19, 1
      %p269 = scmp.lt.s32.totalorder %s262, 8
      %s270 = scalar_select %p269, %s262, 8
      %s271 = smul.addr %s268, 9
      %s272 = sadd.s32 %s270, %s271
      %s273 = smul.addr %s272, 2
      %s274 = scalar_lea.vmem %s0, %s273
      %s275 = smul.u32 4, %s20
      %s276 = ssub.s32 9, %s275
      %p277 = scmp.lt.s32.totalorder %s276, 4
      %s278 = scalar_select %p277, %s276, 4
      %s279 = smul.u32 32, %s278
      %s280 = sadd.s32 %s20, 1
      %s281 = smul.u32 %s280, 4
      %p282 = scmp.lt.s32.totalorder %s19, 1
      %s283 = scalar_select %p282, %s19, 1
      %p284 = scmp.lt.s32.totalorder %s281, 8
      %s285 = scalar_select %p284, %s281, 8
      %s286 = smul.addr %s283, 9
      %s287 = sadd.s32 %s285, %s286
      %s288 = smul.addr %s287, 2
      %s289 = scalar_lea.vmem %s1, %s288
      %s290 = sadd.s32 %s20, 1
      %s291 = smul.u32 %s290, 4
      %s292 = smul.u32 4, %s20
      %p293 = scmp.lt.s32.totalorder %s19, 1
      %s294 = scalar_select %p293, %s19, 1
      %p295 = scmp.lt.s32.totalorder %s292, 7
      %s296 = scalar_select %p295, %s292, 7
      %s297 = smul.addr %s294, 8
      %s298 = sadd.s32 %s296, %s297
      %s299 = smul.addr %s298, 8
      %s300 = scalar_lea.vmem %s4, %s299
      %s301 = smul.u32 4, %s20
      %v303 = vld [vmem:[%s274] sm:$0xff]
      %v304 = vld [vmem:[%s289] sm:$0x3]
      %v306 = vcombine.high %v303, %v303
      %v308 = vunpack.c.l.s4 1983009808
      %v309 = vunpack.c.0.s8 %v308
      %v310 = vlaneseq
      %v311 = vshrl.u32 %v310, 7
      %v312 = vsub.s32 %v309, %v311
      %v313 = vrot.slane %v303, %v312
      %v315 = vunpack.c.l.s4 1983009808
      %v316 = vunpack.c.0.s8 %v315
      %v317 = vlaneseq
      %v318 = vshrl.u32 %v317, 7
      %v319 = vsub.s32 %v316, %v318
      %v320 = vrot.slane %v306, %v319
      %v321 = vcombine.high %v313, %v313
      %v322 = vcombine.high %v320, %v320
      %v323 = vld [vmem:[%s2] sm:$0xf]
      %v324 = vld [vmem:[%s2 + $0x4] sm:$0xf]
      %v325 = vld [vmem:[%s2 + $0x8] sm:$0xf]
      %v326 = vld [vmem:[%s2 + $0xc] sm:$0xf]
      %v327 = vld [vmem:[%s2 + $0x10] sm:$0xf]
      %v328 = vld [vmem:[%s2 + $0x14] sm:$0xf]
      %v329 = vld [vmem:[%s2 + $0x18] sm:$0xf]
      %v330 = vld [vmem:[%s2 + $0x1c] sm:$0xf]
      %v331 = vld [vmem:[%s2 + $0x20] sm:$0xf]
      %333 = vrot.lane.b32.xlu0 %v313, 127
      %v334 = vpop.permute.xlu0 %333
      %335 = vrot.lane.b32.xlu0 %v321, 127
      %v336 = vpop.permute.xlu0 %335
      %337 = vrot.lane.b32.xlu0 %v320, 127
      %v338 = vpop.permute.xlu0 %337
      %339 = vrot.lane.b32.xlu0 %v322, 127
      %v340 = vpop.permute.xlu0 %339
      %341 = vrot.lane.b32.xlu0 %v304, 127
      %v342 = vpop.permute.xlu0 %341
      %vm343 = vcmask 1039360
      %v344 = vsel %vm343, %v334, %v336
      %v345 = vsel %vm343, %v336, %v338
      %v346 = vsel %vm343, %v338, %v340
      %v347 = vsel %vm343, %v340, %v342
      %vm348 = vcmask 31744
      %v350 = vsel %vm348, %v324, 0
      %vm352 = vcmask 1041408
      %v354 = vsel %vm352, %v344, 0
      %v357 = vsel %vm352, %v345, 0
      %v360 = vsel %vm352, %v346, 0
      %v363 = vsel %vm352, %v347, 0
      %365 = vmatprep.subr.bf16.mxu0 %v357
      %366 = vmatpush1.bf16.msra.mxu0 %v354
      %367 = vmatprep.subr.bf16.mxu0 0
      %368 = vmatpush1.bf16.msra.mxu0 0
      %369 = vmatprep.subr.bf16.mxu0 0
      %370 = vmatpush1.bf16.msra.mxu0 0
      %371 = vmatprep.subr.bf16.mxu0 0
      %372 = vmatpush1.bf16.msra.mxu0 0
      %373 = vmatprep.subr.bf16.mxu0 0
      %374 = vmatpush1.bf16.msra.mxu0 0
      %375 = vmatprep.subr.bf16.mxu0 0
      %376 = vmatpush1.bf16.msra.mxu0 0
      %377 = vmatprep.subr.bf16.mxu0 0
      %378 = vmatpush1.bf16.msra.mxu0 0
      %379 = vmatprep.subr.bf16.mxu0 0
      %380 = vmatpush1.bf16.msra.mxu0 0
      %381 = vmatprep.subr.bf16.mxu0 0
      %382 = vmatpush1.bf16.msra.mxu0 0
      %383 = vmatprep.subr.bf16.mxu0 0
      %384 = vmatpush1.bf16.msra.mxu0 0
      %385 = vmatprep.subr.bf16.mxu0 0
      %386 = vmatpush1.bf16.msra.mxu0 0
      %387 = vmatprep.subr.bf16.mxu0 0
      %388 = vmatpush1.bf16.msra.mxu0 0
      %389 = vmatprep.subr.bf16.mxu0 0
      %390 = vmatpush1.bf16.msra.mxu0 0
      %391 = vmatprep.subr.bf16.mxu0 0
      %392 = vmatpush1.bf16.msra.mxu0 0
      %393 = vmatprep.subr.bf16.mxu0 0
      %394 = vmatpush1.bf16.msra.mxu0 0
      %395 = vmatprep.subr.bf16.mxu0 0
      %396 = vmatpush1.bf16.msra.mxu0 0
      %397 = vmatprep.mubr.bf16.mxu0 0
      %398 = vmatmul.mubr.bf16.gmra.mrb[0].mxu0 %v350
      %v399 = vpop.f32.mrb[0].mxu0
      %v400 = vadd.f32 0.0, %v399
      %v401 = vpop.f32.mrb[0].mxu0
      %v402 = vadd.f32 0.0, %v401
      %v403 = vpop.f32.mrb[0].mxu0
      %v404 = vpop.f32.mrb[0].mxu0
      %405 = vdwg.mxu0
      %406 = vmatprep.subr.bf16.mxu0 %v363
      %407 = vmatpush1.bf16.msra.mxu0 %v360
      %408 = vmatprep.subr.bf16.mxu0 0
      %409 = vmatpush1.bf16.msra.mxu0 0
      %410 = vmatprep.subr.bf16.mxu0 0
      %411 = vmatpush1.bf16.msra.mxu0 0
      %412 = vmatprep.subr.bf16.mxu0 0
      %413 = vmatpush1.bf16.msra.mxu0 0
      %414 = vmatprep.subr.bf16.mxu0 0
      %415 = vmatpush1.bf16.msra.mxu0 0
      %416 = vmatprep.subr.bf16.mxu0 0
      %417 = vmatpush1.bf16.msra.mxu0 0
      %418 = vmatprep.subr.bf16.mxu0 0
      %419 = vmatpush1.bf16.msra.mxu0 0
      %420 = vmatprep.subr.bf16.mxu0 0
      %421 = vmatpush1.bf16.msra.mxu0 0
      %422 = vmatprep.subr.bf16.mxu0 0
      %423 = vmatpush1.bf16.msra.mxu0 0
      %424 = vmatprep.subr.bf16.mxu0 0
      %425 = vmatpush1.bf16.msra.mxu0 0
      %426 = vmatprep.subr.bf16.mxu0 0
      %427 = vmatpush1.bf16.msra.mxu0 0
      %428 = vmatprep.subr.bf16.mxu0 0
      %429 = vmatpush1.bf16.msra.mxu0 0
      %430 = vmatprep.subr.bf16.mxu0 0
      %431 = vmatpush1.bf16.msra.mxu0 0
      %432 = vmatprep.subr.bf16.mxu0 0
      %433 = vmatpush1.bf16.msra.mxu0 0
      %434 = vmatprep.subr.bf16.mxu0 0
      %435 = vmatpush1.bf16.msra.mxu0 0
      %436 = vmatprep.subr.bf16.mxu0 0
      %437 = vmatpush1.bf16.msra.mxu0 0
      %438 = vmatprep.mubr.bf16.mxu0 0
      %439 = vmatmul.mubr.bf16.gmra.mrb[0].mxu0 %v350
      %v440 = vpop.f32.mrb[0].mxu0
      %v441 = vadd.f32 0.0, %v440
      %v442 = vpop.f32.mrb[0].mxu0
      %v443 = vadd.f32 0.0, %v442
      %v444 = vpop.f32.mrb[0].mxu0
      %v445 = vpop.f32.mrb[0].mxu0
      %446 = vdwg.mxu0
      %v448 = vsel %vm348, %v323, 0
      %v451 = vsel %vm352, %v313, 0
      %v454 = vsel %vm352, %v321, 0
      %v457 = vsel %vm352, %v320, 0
      %v460 = vsel %vm352, %v322, 0
      %462 = vmatprep.subr.bf16.mxu0 %v454
      %463 = vmatpush1.bf16.msra.mxu0 %v451
      %464 = vmatprep.subr.bf16.mxu0 0
      %465 = vmatpush1.bf16.msra.mxu0 0
      %466 = vmatprep.subr.bf16.mxu0 0
      %467 = vmatpush1.bf16.msra.mxu0 0
      %468 = vmatprep.subr.bf16.mxu0 0
      %469 = vmatpush1.bf16.msra.mxu0 0
      %470 = vmatprep.subr.bf16.mxu0 0
      %471 = vmatpush1.bf16.msra.mxu0 0
      %472 = vmatprep.subr.bf16.mxu0 0
      %473 = vmatpush1.bf16.msra.mxu0 0
      %474 = vmatprep.subr.bf16.mxu0 0
      %475 = vmatpush1.bf16.msra.mxu0 0
      %476 = vmatprep.subr.bf16.mxu0 0
      %477 = vmatpush1.bf16.msra.mxu0 0
      %478 = vmatprep.subr.bf16.mxu0 0
      %479 = vmatpush1.bf16.msra.mxu0 0
      %480 = vmatprep.subr.bf16.mxu0 0
      %481 = vmatpush1.bf16.msra.mxu0 0
      %482 = vmatprep.subr.bf16.mxu0 0
      %483 = vmatpush1.bf16.msra.mxu0 0
      %484 = vmatprep.subr.bf16.mxu0 0
      %485 = vmatpush1.bf16.msra.mxu0 0
      %486 = vmatprep.subr.bf16.mxu0 0
      %487 = vmatpush1.bf16.msra.mxu0 0
      %488 = vmatprep.subr.bf16.mxu0 0
      %489 = vmatpush1.bf16.msra.mxu0 0
      %490 = vmatprep.subr.bf16.mxu0 0
      %491 = vmatpush1.bf16.msra.mxu0 0
      %492 = vmatprep.subr.bf16.mxu0 0
      %493 = vmatpush1.bf16.msra.mxu0 0
      %494 = vmatprep.mubr.bf16.mxu0 0
      %495 = vmatmul.mubr.bf16.gmra.mrb[0].mxu0 %v448
      %v496 = vpop.f32.mrb[0].mxu0
      %v497 = vadd.f32 %v400, %v496
      %v498 = vpop.f32.mrb[0].mxu0
      %v499 = vadd.f32 %v402, %v498
      %v500 = vpop.f32.mrb[0].mxu0
      %v501 = vpop.f32.mrb[0].mxu0
      %502 = vdwg.mxu0
      %503 = vmatprep.subr.bf16.mxu0 %v460
      %504 = vmatpush1.bf16.msra.mxu0 %v457
      %505 = vmatprep.subr.bf16.mxu0 0
      %506 = vmatpush1.bf16.msra.mxu0 0
      %507 = vmatprep.subr.bf16.mxu0 0
      %508 = vmatpush1.bf16.msra.mxu0 0
      %509 = vmatprep.subr.bf16.mxu0 0
      %510 = vmatpush1.bf16.msra.mxu0 0
      %511 = vmatprep.subr.bf16.mxu0 0
      %512 = vmatpush1.bf16.msra.mxu0 0
      %513 = vmatprep.subr.bf16.mxu0 0
      %514 = vmatpush1.bf16.msra.mxu0 0
      %515 = vmatprep.subr.bf16.mxu0 0
      %516 = vmatpush1.bf16.msra.mxu0 0
      %517 = vmatprep.subr.bf16.mxu0 0
      %518 = vmatpush1.bf16.msra.mxu0 0
      %519 = vmatprep.subr.bf16.mxu0 0
      %520 = vmatpush1.bf16.msra.mxu0 0
      %521 = vmatprep.subr.bf16.mxu0 0
      %522 = vmatpush1.bf16.msra.mxu0 0
      %523 = vmatprep.subr.bf16.mxu0 0
      %524 = vmatpush1.bf16.msra.mxu0 0
      %525 = vmatprep.subr.bf16.mxu0 0
      %526 = vmatpush1.bf16.msra.mxu0 0
      %527 = vmatprep.subr.bf16.mxu0 0
      %528 = vmatpush1.bf16.msra.mxu0 0
      %529 = vmatprep.subr.bf16.mxu0 0
      %530 = vmatpush1.bf16.msra.mxu0 0
      %531 = vmatprep.subr.bf16.mxu0 0
      %532 = vmatpush1.bf16.msra.mxu0 0
      %533 = vmatprep.subr.bf16.mxu0 0
      %534 = vmatpush1.bf16.msra.mxu0 0
      %535 = vmatprep.mubr.bf16.mxu0 0
      %536 = vmatmul.mubr.bf16.gmra.mrb[0].mxu0 %v448
      %v537 = vpop.f32.mrb[0].mxu0
      %v538 = vadd.f32 %v441, %v537
      %v539 = vpop.f32.mrb[0].mxu0
      %v540 = vadd.f32 %v443, %v539
      %v541 = vpop.f32.mrb[0].mxu0
      %v542 = vpop.f32.mrb[0].mxu0
      %543 = vdwg.mxu0
      %544 = vrot.lane.b32.xlu0 %v313, 126
      %v545 = vpop.permute.xlu0 %544
      %546 = vrot.lane.b32.xlu0 %v321, 126
      %v547 = vpop.permute.xlu0 %546
      %548 = vrot.lane.b32.xlu0 %v320, 126
      %v549 = vpop.permute.xlu0 %548
      %550 = vrot.lane.b32.xlu0 %v322, 126
      %v551 = vpop.permute.xlu0 %550
      %552 = vrot.lane.b32.xlu0 %v304, 126
      %v553 = vpop.permute.xlu0 %552
      %vm554 = vcmask 1031168
      %v555 = vsel %vm554, %v545, %v547
      %v556 = vsel %vm554, %v547, %v549
      %v557 = vsel %vm554, %v549, %v551
      %v558 = vsel %vm554, %v551, %v553
      %v560 = vsel %vm348, %v325, 0
      %v563 = vsel %vm352, %v555, 0
      %v566 = vsel %vm352, %v556, 0
      %v569 = vsel %vm352, %v557, 0
      %v572 = vsel %vm352, %v558, 0
      %574 = vmatprep.subr.bf16.mxu0 %v566
      %575 = vmatpush1.bf16.msra.mxu0 %v563
      %576 = vmatprep.subr.bf16.mxu0 0
      %577 = vmatpush1.bf16.msra.mxu0 0
      %578 = vmatprep.subr.bf16.mxu0 0
      %579 = vmatpush1.bf16.msra.mxu0 0
      %580 = vmatprep.subr.bf16.mxu0 0
      %581 = vmatpush1.bf16.msra.mxu0 0
      %582 = vmatprep.subr.bf16.mxu0 0
      %583 = vmatpush1.bf16.msra.mxu0 0
      %584 = vmatprep.subr.bf16.mxu0 0
      %585 = vmatpush1.bf16.msra.mxu0 0
      %586 = vmatprep.subr.bf16.mxu0 0
      %587 = vmatpush1.bf16.msra.mxu0 0
      %588 = vmatprep.subr.bf16.mxu0 0
      %589 = vmatpush1.bf16.msra.mxu0 0
      %590 = vmatprep.subr.bf16.mxu0 0
      %591 = vmatpush1.bf16.msra.mxu0 0
      %592 = vmatprep.subr.bf16.mxu0 0
      %593 = vmatpush1.bf16.msra.mxu0 0
      %594 = vmatprep.subr.bf16.mxu0 0
      %595 = vmatpush1.bf16.msra.mxu0 0
      %596 = vmatprep.subr.bf16.mxu0 0
      %597 = vmatpush1.bf16.msra.mxu0 0
      %598 = vmatprep.subr.bf16.mxu0 0
      %599 = vmatpush1.bf16.msra.mxu0 0
      %600 = vmatprep.subr.bf16.mxu0 0
      %601 = vmatpush1.bf16.msra.mxu0 0
      %602 = vmatprep.subr.bf16.mxu0 0
      %603 = vmatpush1.bf16.msra.mxu0 0
      %604 = vmatprep.subr.bf16.mxu0 0
      %605 = vmatpush1.bf16.msra.mxu0 0
      %606 = vmatprep.mubr.bf16.mxu0 0
      %607 = vmatmul.mubr.bf16.gmra.mrb[0].mxu0 %v560
      %v608 = vpop.f32.mrb[0].mxu0
      %v609 = vadd.f32 0.0, %v608
      %v610 = vpop.f32.mrb[0].mxu0
      %v611 = vadd.f32 0.0, %v610
      %v612 = vpop.f32.mrb[0].mxu0
      %v613 = vpop.f32.mrb[0].mxu0
      %614 = vdwg.mxu0
      %615 = vmatprep.subr.bf16.mxu0 %v572
      %616 = vmatpush1.bf16.msra.mxu0 %v569
      %617 = vmatprep.subr.bf16.mxu0 0
      %618 = vmatpush1.bf16.msra.mxu0 0
      %619 = vmatprep.subr.bf16.mxu0 0
      %620 = vmatpush1.bf16.msra.mxu0 0
      %621 = vmatprep.subr.bf16.mxu0 0
      %622 = vmatpush1.bf16.msra.mxu0 0
      %623 = vmatprep.subr.bf16.mxu0 0
      %624 = vmatpush1.bf16.msra.mxu0 0
      %625 = vmatprep.subr.bf16.mxu0 0
      %626 = vmatpush1.bf16.msra.mxu0 0
      %627 = vmatprep.subr.bf16.mxu0 0
      %628 = vmatpush1.bf16.msra.mxu0 0
      %629 = vmatprep.subr.bf16.mxu0 0
      %630 = vmatpush1.bf16.msra.mxu0 0
      %631 = vmatprep.subr.bf16.mxu0 0
      %632 = vmatpush1.bf16.msra.mxu0 0
      %633 = vmatprep.subr.bf16.mxu0 0
      %634 = vmatpush1.bf16.msra.mxu0 0
      %635 = vmatprep.subr.bf16.mxu0 0
      %636 = vmatpush1.bf16.msra.mxu0 0
      %637 = vmatprep.subr.bf16.mxu0 0
      %638 = vmatpush1.bf16.msra.mxu0 0
      %639 = vmatprep.subr.bf16.mxu0 0
      %640 = vmatpush1.bf16.msra.mxu0 0
      %641 = vmatprep.subr.bf16.mxu0 0
      %642 = vmatpush1.bf16.msra.mxu0 0
      %643 = vmatprep.subr.bf16.mxu0 0
      %644 = vmatpush1.bf16.msra.mxu0 0
      %645 = vmatprep.subr.bf16.mxu0 0
      %646 = vmatpush1.bf16.msra.mxu0 0
      %647 = vmatprep.mubr.bf16.mxu0 0
      %648 = vmatmul.mubr.bf16.gmra.mrb[0].mxu0 %v560
      %v649 = vpop.f32.mrb[0].mxu0
      %v650 = vadd.f32 0.0, %v649
      %v651 = vpop.f32.mrb[0].mxu0
      %v652 = vadd.f32 0.0, %v651
      %v653 = vpop.f32.mrb[0].mxu0
      %v654 = vpop.f32.mrb[0].mxu0
      %655 = vdwg.mxu0
      %v656 = vadd.f32 %v497, %v609
      %v657 = vadd.f32 %v499, %v611
      %v658 = vadd.f32 %v538, %v650
      %v659 = vadd.f32 %v540, %v652
      %660 = vrot.lane.b32.xlu0 %v313, 96
      %v661 = vpop.permute.xlu0 %660
      %662 = vrot.lane.b32.xlu0 %v321, 96
      %v663 = vpop.permute.xlu0 %662
      %664 = vrot.lane.b32.xlu0 %v320, 96
      %v665 = vpop.permute.xlu0 %664
      %666 = vrot.lane.b32.xlu0 %v322, 96
      %v667 = vpop.permute.xlu0 %666
      %668 = vrot.lane.b32.xlu0 %v304, 96
      %v669 = vpop.permute.xlu0 %668
      %vm670 = vcmask 785408
      %v671 = vsel %vm670, %v661, %v663
      %v672 = vsel %vm670, %v663, %v665
      %v673 = vsel %vm670, %v665, %v667
      %v674 = vsel %vm670, %v667, %v669
      %v676 = vsel %vm348, %v326, 0
      %v679 = vsel %vm352, %v671, 0
      %v682 = vsel %vm352, %v672, 0
      %v685 = vsel %vm352, %v673, 0
      %v688 = vsel %vm352, %v674, 0
      %690 = vmatprep.subr.bf16.mxu0 %v682
      %691 = vmatpush1.bf16.msra.mxu0 %v679
      %692 = vmatprep.subr.bf16.mxu0 0
      %693 = vmatpush1.bf16.msra.mxu0 0
      %694 = vmatprep.subr.bf16.mxu0 0
      %695 = vmatpush1.bf16.msra.mxu0 0
      %696 = vmatprep.subr.bf16.mxu0 0
      %697 = vmatpush1.bf16.msra.mxu0 0
      %698 = vmatprep.subr.bf16.mxu0 0
      %699 = vmatpush1.bf16.msra.mxu0 0
      %700 = vmatprep.subr.bf16.mxu0 0
      %701 = vmatpush1.bf16.msra.mxu0 0
      %702 = vmatprep.subr.bf16.mxu0 0
      %703 = vmatpush1.bf16.msra.mxu0 0
      %704 = vmatprep.subr.bf16.mxu0 0
      %705 = vmatpush1.bf16.msra.mxu0 0
      %706 = vmatprep.subr.bf16.mxu0 0
      %707 = vmatpush1.bf16.msra.mxu0 0
      %708 = vmatprep.subr.bf16.mxu0 0
      %709 = vmatpush1.bf16.msra.mxu0 0
      %710 = vmatprep.subr.bf16.mxu0 0
      %711 = vmatpush1.bf16.msra.mxu0 0
      %712 = vmatprep.subr.bf16.mxu0 0
      %713 = vmatpush1.bf16.msra.mxu0 0
      %714 = vmatprep.subr.bf16.mxu0 0
      %715 = vmatpush1.bf16.msra.mxu0 0
      %716 = vmatprep.subr.bf16.mxu0 0
      %717 = vmatpush1.bf16.msra.mxu0 0
      %718 = vmatprep.subr.bf16.mxu0 0
      %719 = vmatpush1.bf16.msra.mxu0 0
      %720 = vmatprep.subr.bf16.mxu0 0
      %721 = vmatpush1.bf16.msra.mxu0 0
      %722 = vmatprep.mubr.bf16.mxu0 0
      %723 = vmatmul.mubr.bf16.gmra.mrb[0].mxu0 %v676
      %v724 = vpop.f32.mrb[0].mxu0
      %v725 = vadd.f32 0.0, %v724
      %v726 = vpop.f32.mrb[0].mxu0
      %v727 = vadd.f32 0.0, %v726
      %v728 = vpop.f32.mrb[0].mxu0
      %v729 = vpop.f32.mrb[0].mxu0
      %730 = vdwg.mxu0
      %731 = vmatprep.subr.bf16.mxu0 %v688
      %732 = vmatpush1.bf16.msra.mxu0 %v685
      %733 = vmatprep.subr.bf16.mxu0 0
      %734 = vmatpush1.bf16.msra.mxu0 0
      %735 = vmatprep.subr.bf16.mxu0 0
      %736 = vmatpush1.bf16.msra.mxu0 0
      %737 = vmatprep.subr.bf16.mxu0 0
      %738 = vmatpush1.bf16.msra.mxu0 0
      %739 = vmatprep.subr.bf16.mxu0 0
      %740 = vmatpush1.bf16.msra.mxu0 0
      %741 = vmatprep.subr.bf16.mxu0 0
      %742 = vmatpush1.bf16.msra.mxu0 0
      %743 = vmatprep.subr.bf16.mxu0 0
      %744 = vmatpush1.bf16.msra.mxu0 0
      %745 = vmatprep.subr.bf16.mxu0 0
      %746 = vmatpush1.bf16.msra.mxu0 0
      %747 = vmatprep.subr.bf16.mxu0 0
      %748 = vmatpush1.bf16.msra.mxu0 0
      %749 = vmatprep.subr.bf16.mxu0 0
      %750 = vmatpush1.bf16.msra.mxu0 0
      %751 = vmatprep.subr.bf16.mxu0 0
      %752 = vmatpush1.bf16.msra.mxu0 0
      %753 = vmatprep.subr.bf16.mxu0 0
      %754 = vmatpush1.bf16.msra.mxu0 0
      %755 = vmatprep.subr.bf16.mxu0 0
      %756 = vmatpush1.bf16.msra.mxu0 0
      %757 = vmatprep.subr.bf16.mxu0 0
      %758 = vmatpush1.bf16.msra.mxu0 0
      %759 = vmatprep.subr.bf16.mxu0 0
      %760 = vmatpush1.bf16.msra.mxu0 0
      %761 = vmatprep.subr.bf16.mxu0 0
      %762 = vmatpush1.bf16.msra.mxu0 0
      %763 = vmatprep.mubr.bf16.mxu0 0
      %764 = vmatmul.mubr.bf16.gmra.mrb[0].mxu0 %v676
      %v765 = vpop.f32.mrb[0].mxu0
      %v766 = vadd.f32 0.0, %v765
      %v767 = vpop.f32.mrb[0].mxu0
      %v768 = vadd.f32 0.0, %v767
      %v769 = vpop.f32.mrb[0].mxu0
      %v770 = vpop.f32.mrb[0].mxu0
      %771 = vdwg.mxu0
      %v772 = vadd.f32 %v656, %v725
      %v773 = vadd.f32 %v657, %v727
      %v774 = vadd.f32 %v658, %v766
      %v775 = vadd.f32 %v659, %v768
      %776 = vrot.lane.b32.xlu0 %v313, 95
      %v777 = vpop.permute.xlu0 %776
      %778 = vrot.lane.b32.xlu0 %v321, 95
      %v779 = vpop.permute.xlu0 %778
      %780 = vrot.lane.b32.xlu0 %v320, 95
      %v781 = vpop.permute.xlu0 %780
      %782 = vrot.lane.b32.xlu0 %v322, 95
      %v783 = vpop.permute.xlu0 %782
      %784 = vrot.lane.b32.xlu0 %v304, 95
      %v785 = vpop.permute.xlu0 %784
      %vm786 = vcmask 777216
      %v787 = vsel %vm786, %v777, %v779
      %v788 = vsel %vm786, %v779, %v781
      %v789 = vsel %vm786, %v781, %v783
      %v790 = vsel %vm786, %v783, %v785
      %v792 = vsel %vm348, %v327, 0
      %v795 = vsel %vm352, %v787, 0
      %v798 = vsel %vm352, %v788, 0
      %v801 = vsel %vm352, %v789, 0
      %v804 = vsel %vm352, %v790, 0
      %806 = vmatprep.subr.bf16.mxu0 %v798
      %807 = vmatpush1.bf16.msra.mxu0 %v795
      %808 = vmatprep.subr.bf16.mxu0 0
      %809 = vmatpush1.bf16.msra.mxu0 0
      %810 = vmatprep.subr.bf16.mxu0 0
      %811 = vmatpush1.bf16.msra.mxu0 0
      %812 = vmatprep.subr.bf16.mxu0 0
      %813 = vmatpush1.bf16.msra.mxu0 0
      %814 = vmatprep.subr.bf16.mxu0 0
      %815 = vmatpush1.bf16.msra.mxu0 0
      %816 = vmatprep.subr.bf16.mxu0 0
      %817 = vmatpush1.bf16.msra.mxu0 0
      %818 = vmatprep.subr.bf16.mxu0 0
      %819 = vmatpush1.bf16.msra.mxu0 0
      %820 = vmatprep.subr.bf16.mxu0 0
      %821 = vmatpush1.bf16.msra.mxu0 0
      %822 = vmatprep.subr.bf16.mxu0 0
      %823 = vmatpush1.bf16.msra.mxu0 0
      %824 = vmatprep.subr.bf16.mxu0 0
      %825 = vmatpush1.bf16.msra.mxu0 0
      %826 = vmatprep.subr.bf16.mxu0 0
      %827 = vmatpush1.bf16.msra.mxu0 0
      %828 = vmatprep.subr.bf16.mxu0 0
      %829 = vmatpush1.bf16.msra.mxu0 0
      %830 = vmatprep.subr.bf16.mxu0 0
      %831 = vmatpush1.bf16.msra.mxu0 0
      %832 = vmatprep.subr.bf16.mxu0 0
      %833 = vmatpush1.bf16.msra.mxu0 0
      %834 = vmatprep.subr.bf16.mxu0 0
      %835 = vmatpush1.bf16.msra.mxu0 0
      %836 = vmatprep.subr.bf16.mxu0 0
      %837 = vmatpush1.bf16.msra.mxu0 0
      %838 = vmatprep.mubr.bf16.mxu0 0
      %839 = vmatmul.mubr.bf16.gmra.mrb[0].mxu0 %v792
      %v840 = vpop.f32.mrb[0].mxu0
      %v841 = vadd.f32 0.0, %v840
      %v842 = vpop.f32.mrb[0].mxu0
      %v843 = vadd.f32 0.0, %v842
      %v844 = vpop.f32.mrb[0].mxu0
      %v845 = vpop.f32.mrb[0].mxu0
      %846 = vdwg.mxu0
      %847 = vmatprep.subr.bf16.mxu0 %v804
      %848 = vmatpush1.bf16.msra.mxu0 %v801
      %849 = vmatprep.subr.bf16.mxu0 0
      %850 = vmatpush1.bf16.msra.mxu0 0
      %851 = vmatprep.subr.bf16.mxu0 0
      %852 = vmatpush1.bf16.msra.mxu0 0
      %853 = vmatprep.subr.bf16.mxu0 0
      %854 = vmatpush1.bf16.msra.mxu0 0
      %855 = vmatprep.subr.bf16.mxu0 0
      %856 = vmatpush1.bf16.msra.mxu0 0
      %857 = vmatprep.subr.bf16.mxu0 0
      %858 = vmatpush1.bf16.msra.mxu0 0
      %859 = vmatprep.subr.bf16.mxu0 0
      %860 = vmatpush1.bf16.msra.mxu0 0
      %861 = vmatprep.subr.bf16.mxu0 0
      %862 = vmatpush1.bf16.msra.mxu0 0
      %863 = vmatprep.subr.bf16.mxu0 0
      %864 = vmatpush1.bf16.msra.mxu0 0
      %865 = vmatprep.subr.bf16.mxu0 0
      %866 = vmatpush1.bf16.msra.mxu0 0
      %867 = vmatprep.subr.bf16.mxu0 0
      %868 = vmatpush1.bf16.msra.mxu0 0
      %869 = vmatprep.subr.bf16.mxu0 0
      %870 = vmatpush1.bf16.msra.mxu0 0
      %871 = vmatprep.subr.bf16.mxu0 0
      %872 = vmatpush1.bf16.msra.mxu0 0
      %873 = vmatprep.subr.bf16.mxu0 0
      %874 = vmatpush1.bf16.msra.mxu0 0
      %875 = vmatprep.subr.bf16.mxu0 0
      %876 = vmatpush1.bf16.msra.mxu0 0
      %877 = vmatprep.subr.bf16.mxu0 0
      %878 = vmatpush1.bf16.msra.mxu0 0
      %879 = vmatprep.mubr.bf16.mxu0 0
      %880 = vmatmul.mubr.bf16.gmra.mrb[0].mxu0 %v792
      %v881 = vpop.f32.mrb[0].mxu0
      %v882 = vadd.f32 0.0, %v881
      %v883 = vpop.f32.mrb[0].mxu0
      %v884 = vadd.f32 0.0, %v883
      %v885 = vpop.f32.mrb[0].mxu0
      %v886 = vpop.f32.mrb[0].mxu0
      %887 = vdwg.mxu0
      %v888 = vadd.f32 %v772, %v841
      %v889 = vadd.f32 %v773, %v843
      %v890 = vadd.f32 %v774, %v882
      %v891 = vadd.f32 %v775, %v884
      %892 = vrot.lane.b32.xlu0 %v313, 94
      %v893 = vpop.permute.xlu0 %892
      %894 = vrot.lane.b32.xlu0 %v321, 94
      %v895 = vpop.permute.xlu0 %894
      %896 = vrot.lane.b32.xlu0 %v320, 94
      %v897 = vpop.permute.xlu0 %896
      %898 = vrot.lane.b32.xlu0 %v322, 94
      %v899 = vpop.permute.xlu0 %898
      %900 = vrot.lane.b32.xlu0 %v304, 94
      %v901 = vpop.permute.xlu0 %900
      %vm902 = vcmask 769024
      %v903 = vsel %vm902, %v893, %v895
      %v904 = vsel %vm902, %v895, %v897
      %v905 = vsel %vm902, %v897, %v899
      %v906 = vsel %vm902, %v899, %v901
      %v908 = vsel %vm348, %v328, 0
      %v911 = vsel %vm352, %v903, 0
      %v914 = vsel %vm352, %v904, 0
      %v917 = vsel %vm352, %v905, 0
      %v920 = vsel %vm352, %v906, 0
      %922 = vmatprep.subr.bf16.mxu0 %v914
      %923 = vmatpush1.bf16.msra.mxu0 %v911
      %924 = vmatprep.subr.bf16.mxu0 0
      %925 = vmatpush1.bf16.msra.mxu0 0
      %926 = vmatprep.subr.bf16.mxu0 0
      %927 = vmatpush1.bf16.msra.mxu0 0
      %928 = vmatprep.subr.bf16.mxu0 0
      %929 = vmatpush1.bf16.msra.mxu0 0
      %930 = vmatprep.subr.bf16.mxu0 0
      %931 = vmatpush1.bf16.msra.mxu0 0
      %932 = vmatprep.subr.bf16.mxu0 0
      %933 = vmatpush1.bf16.msra.mxu0 0
      %934 = vmatprep.subr.bf16.mxu0 0
      %935 = vmatpush1.bf16.msra.mxu0 0
      %936 = vmatprep.subr.bf16.mxu0 0
      %937 = vmatpush1.bf16.msra.mxu0 0
      %938 = vmatprep.subr.bf16.mxu0 0
      %939 = vmatpush1.bf16.msra.mxu0 0
      %940 = vmatprep.subr.bf16.mxu0 0
      %941 = vmatpush1.bf16.msra.mxu0 0
      %942 = vmatprep.subr.bf16.mxu0 0
      %943 = vmatpush1.bf16.msra.mxu0 0
      %944 = vmatprep.subr.bf16.mxu0 0
      %945 = vmatpush1.bf16.msra.mxu0 0
      %946 = vmatprep.subr.bf16.mxu0 0
      %947 = vmatpush1.bf16.msra.mxu0 0
      %948 = vmatprep.subr.bf16.mxu0 0
      %949 = vmatpush1.bf16.msra.mxu0 0
      %950 = vmatprep.subr.bf16.mxu0 0
      %951 = vmatpush1.bf16.msra.mxu0 0
      %952 = vmatprep.subr.bf16.mxu0 0
      %953 = vmatpush1.bf16.msra.mxu0 0
      %954 = vmatprep.mubr.bf16.mxu0 0
      %955 = vmatmul.mubr.bf16.gmra.mrb[0].mxu0 %v908
      %v956 = vpop.f32.mrb[0].mxu0
      %v957 = vadd.f32 0.0, %v956
      %v958 = vpop.f32.mrb[0].mxu0
      %v959 = vadd.f32 0.0, %v958
      %v960 = vpop.f32.mrb[0].mxu0
      %v961 = vpop.f32.mrb[0].mxu0
      %962 = vdwg.mxu0
      %963 = vmatprep.subr.bf16.mxu0 %v920
      %964 = vmatpush1.bf16.msra.mxu0 %v917
      %965 = vmatprep.subr.bf16.mxu0 0
      %966 = vmatpush1.bf16.msra.mxu0 0
      %967 = vmatprep.subr.bf16.mxu0 0
      %968 = vmatpush1.bf16.msra.mxu0 0
      %969 = vmatprep.subr.bf16.mxu0 0
      %970 = vmatpush1.bf16.msra.mxu0 0
      %971 = vmatprep.subr.bf16.mxu0 0
      %972 = vmatpush1.bf16.msra.mxu0 0
      %973 = vmatprep.subr.bf16.mxu0 0
      %974 = vmatpush1.bf16.msra.mxu0 0
      %975 = vmatprep.subr.bf16.mxu0 0
      %976 = vmatpush1.bf16.msra.mxu0 0
      %977 = vmatprep.subr.bf16.mxu0 0
      %978 = vmatpush1.bf16.msra.mxu0 0
      %979 = vmatprep.subr.bf16.mxu0 0
      %980 = vmatpush1.bf16.msra.mxu0 0
      %981 = vmatprep.subr.bf16.mxu0 0
      %982 = vmatpush1.bf16.msra.mxu0 0
      %983 = vmatprep.subr.bf16.mxu0 0
      %984 = vmatpush1.bf16.msra.mxu0 0
      %985 = vmatprep.subr.bf16.mxu0 0
      %986 = vmatpush1.bf16.msra.mxu0 0
      %987 = vmatprep.subr.bf16.mxu0 0
      %988 = vmatpush1.bf16.msra.mxu0 0
      %989 = vmatprep.subr.bf16.mxu0 0
      %990 = vmatpush1.bf16.msra.mxu0 0
      %991 = vmatprep.subr.bf16.mxu0 0
      %992 = vmatpush1.bf16.msra.mxu0 0
      %993 = vmatprep.subr.bf16.mxu0 0
      %994 = vmatpush1.bf16.msra.mxu0 0
      %995 = vmatprep.mubr.bf16.mxu0 0
      %996 = vmatmul.mubr.bf16.gmra.mrb[0].mxu0 %v908
      %v997 = vpop.f32.mrb[0].mxu0
      %v998 = vadd.f32 0.0, %v997
      %v999 = vpop.f32.mrb[0].mxu0
      %v1000 = vadd.f32 0.0, %v999
      %v1001 = vpop.f32.mrb[0].mxu0
      %v1002 = vpop.f32.mrb[0].mxu0
      %1003 = vdwg.mxu0
      %v1004 = vadd.f32 %v888, %v957
      %v1005 = vadd.f32 %v889, %v959
      %v1006 = vadd.f32 %v890, %v998
      %v1007 = vadd.f32 %v891, %v1000
      %1008 = vrot.lane.b32.xlu0 %v313, 64
      %v1009 = vpop.permute.xlu0 %1008
      %1010 = vrot.lane.b32.xlu0 %v321, 64
      %v1011 = vpop.permute.xlu0 %1010
      %1012 = vrot.lane.b32.xlu0 %v320, 64
      %v1013 = vpop.permute.xlu0 %1012
      %1014 = vrot.lane.b32.xlu0 %v322, 64
      %v1015 = vpop.permute.xlu0 %1014
      %1016 = vrot.lane.b32.xlu0 %v304, 64
      %v1017 = vpop.permute.xlu0 %1016
      %vm1018 = vcmask 523264
      %v1019 = vsel %vm1018, %v1009, %v1011
      %v1020 = vsel %vm1018, %v1011, %v1013
      %v1021 = vsel %vm1018, %v1013, %v1015
      %v1022 = vsel %vm1018, %v1015, %v1017
      %v1024 = vsel %vm348, %v329, 0
      %v1027 = vsel %vm352, %v1019, 0
      %v1030 = vsel %vm352, %v1020, 0
      %v1033 = vsel %vm352, %v1021, 0
      %v1036 = vsel %vm352, %v1022, 0
      %1038 = vmatprep.subr.bf16.mxu0 %v1030
      %1039 = vmatpush1.bf16.msra.mxu0 %v1027
      %1040 = vmatprep.subr.bf16.mxu0 0
      %1041 = vmatpush1.bf16.msra.mxu0 0
      %1042 = vmatprep.subr.bf16.mxu0 0
      %1043 = vmatpush1.bf16.msra.mxu0 0
      %1044 = vmatprep.subr.bf16.mxu0 0
      %1045 = vmatpush1.bf16.msra.mxu0 0
      %1046 = vmatprep.subr.bf16.mxu0 0
      %1047 = vmatpush1.bf16.msra.mxu0 0
      %1048 = vmatprep.subr.bf16.mxu0 0
      %1049 = vmatpush1.bf16.msra.mxu0 0
      %1050 = vmatprep.subr.bf16.mxu0 0
      %1051 = vmatpush1.bf16.msra.mxu0 0
      %1052 = vmatprep.subr.bf16.mxu0 0
      %1053 = vmatpush1.bf16.msra.mxu0 0
      %1054 = vmatprep.subr.bf16.mxu0 0
      %1055 = vmatpush1.bf16.msra.mxu0 0
      %1056 = vmatprep.subr.bf16.mxu0 0
      %1057 = vmatpush1.bf16.msra.mxu0 0
      %1058 = vmatprep.subr.bf16.mxu0 0
      %1059 = vmatpush1.bf16.msra.mxu0 0
      %1060 = vmatprep.subr.bf16.mxu0 0
      %1061 = vmatpush1.bf16.msra.mxu0 0
      %1062 = vmatprep.subr.bf16.mxu0 0
      %1063 = vmatpush1.bf16.msra.mxu0 0
      %1064 = vmatprep.subr.bf16.mxu0 0
      %1065 = vmatpush1.bf16.msra.mxu0 0
      %1066 = vmatprep.subr.bf16.mxu0 0
      %1067 = vmatpush1.bf16.msra.mxu0 0
      %1068 = vmatprep.subr.bf16.mxu0 0
      %1069 = vmatpush1.bf16.msra.mxu0 0
      %1070 = vmatprep.mubr.bf16.mxu0 0
      %1071 = vmatmul.mubr.bf16.gmra.mrb[0].mxu0 %v1024
      %v1072 = vpop.f32.mrb[0].mxu0
      %v1073 = vadd.f32 0.0, %v1072
      %v1074 = vpop.f32.mrb[0].mxu0
      %v1075 = vadd.f32 0.0, %v1074
      %v1076 = vpop.f32.mrb[0].mxu0
      %v1077 = vpop.f32.mrb[0].mxu0
      %1078 = vdwg.mxu0
      %1079 = vmatprep.subr.bf16.mxu0 %v1036
      %1080 = vmatpush1.bf16.msra.mxu0 %v1033
      %1081 = vmatprep.subr.bf16.mxu0 0
      %1082 = vmatpush1.bf16.msra.mxu0 0
      %1083 = vmatprep.subr.bf16.mxu0 0
      %1084 = vmatpush1.bf16.msra.mxu0 0
      %1085 = vmatprep.subr.bf16.mxu0 0
      %1086 = vmatpush1.bf16.msra.mxu0 0
      %1087 = vmatprep.subr.bf16.mxu0 0
      %1088 = vmatpush1.bf16.msra.mxu0 0
      %1089 = vmatprep.subr.bf16.mxu0 0
      %1090 = vmatpush1.bf16.msra.mxu0 0
      %1091 = vmatprep.subr.bf16.mxu0 0
      %1092 = vmatpush1.bf16.msra.mxu0 0
      %1093 = vmatprep.subr.bf16.mxu0 0
      %1094 = vmatpush1.bf16.msra.mxu0 0
      %1095 = vmatprep.subr.bf16.mxu0 0
      %1096 = vmatpush1.bf16.msra.mxu0 0
      %1097 = vmatprep.subr.bf16.mxu0 0
      %1098 = vmatpush1.bf16.msra.mxu0 0
      %1099 = vmatprep.subr.bf16.mxu0 0
      %1100 = vmatpush1.bf16.msra.mxu0 0
      %1101 = vmatprep.subr.bf16.mxu0 0
      %1102 = vmatpush1.bf16.msra.mxu0 0
      %1103 = vmatprep.subr.bf16.mxu0 0
      %1104 = vmatpush1.bf16.msra.mxu0 0
      %1105 = vmatprep.subr.bf16.mxu0 0
      %1106 = vmatpush1.bf16.msra.mxu0 0
      %1107 = vmatprep.subr.bf16.mxu0 0
      %1108 = vmatpush1.bf16.msra.mxu0 0
      %1109 = vmatprep.subr.bf16.mxu0 0
      %1110 = vmatpush1.bf16.msra.mxu0 0
      %1111 = vmatprep.mubr.bf16.mxu0 0
      %1112 = vmatmul.mubr.bf16.gmra.mrb[0].mxu0 %v1024
      %v1113 = vpop.f32.mrb[0].mxu0
      %v1114 = vadd.f32 0.0, %v1113
      %v1115 = vpop.f32.mrb[0].mxu0
      %v1116 = vadd.f32 0.0, %v1115
      %v1117 = vpop.f32.mrb[0].mxu0
      %v1118 = vpop.f32.mrb[0].mxu0
      %1119 = vdwg.mxu0
      %v1120 = vadd.f32 %v1004, %v1073
      %v1121 = vadd.f32 %v1005, %v1075
      %v1122 = vadd.f32 %v1006, %v1114
      %v1123 = vadd.f32 %v1007, %v1116
      %1124 = vrot.lane.b32.xlu0 %v313, 63
      %v1125 = vpop.permute.xlu0 %1124
      %1126 = vrot.lane.b32.xlu0 %v321, 63
      %v1127 = vpop.permute.xlu0 %1126
      %1128 = vrot.lane.b32.xlu0 %v320, 63
      %v1129 = vpop.permute.xlu0 %1128
      %1130 = vrot.lane.b32.xlu0 %v322, 63
      %v1131 = vpop.permute.xlu0 %1130
      %1132 = vrot.lane.b32.xlu0 %v304, 63
      %v1133 = vpop.permute.xlu0 %1132
      %vm1134 = vcmask 515072
      %v1135 = vsel %vm1134, %v1125, %v1127
      %v1136 = vsel %vm1134, %v1127, %v1129
      %v1137 = vsel %vm1134, %v1129, %v1131
      %v1138 = vsel %vm1134, %v1131, %v1133
      %v1140 = vsel %vm348, %v330, 0
      %v1143 = vsel %vm352, %v1135, 0
      %v1146 = vsel %vm352, %v1136, 0
      %v1149 = vsel %vm352, %v1137, 0
      %v1152 = vsel %vm352, %v1138, 0
      %1154 = vmatprep.subr.bf16.mxu0 %v1146
      %1155 = vmatpush1.bf16.msra.mxu0 %v1143
      %1156 = vmatprep.subr.bf16.mxu0 0
      %1157 = vmatpush1.bf16.msra.mxu0 0
      %1158 = vmatprep.subr.bf16.mxu0 0
      %1159 = vmatpush1.bf16.msra.mxu0 0
      %1160 = vmatprep.subr.bf16.mxu0 0
      %1161 = vmatpush1.bf16.msra.mxu0 0
      %1162 = vmatprep.subr.bf16.mxu0 0
      %1163 = vmatpush1.bf16.msra.mxu0 0
      %1164 = vmatprep.subr.bf16.mxu0 0
      %1165 = vmatpush1.bf16.msra.mxu0 0
      %1166 = vmatprep.subr.bf16.mxu0 0
      %1167 = vmatpush1.bf16.msra.mxu0 0
      %1168 = vmatprep.subr.bf16.mxu0 0
      %1169 = vmatpush1.bf16.msra.mxu0 0
      %1170 = vmatprep.subr.bf16.mxu0 0
      %1171 = vmatpush1.bf16.msra.mxu0 0
      %1172 = vmatprep.subr.bf16.mxu0 0
      %1173 = vmatpush1.bf16.msra.mxu0 0
      %1174 = vmatprep.subr.bf16.mxu0 0
      %1175 = vmatpush1.bf16.msra.mxu0 0
      %1176 = vmatprep.subr.bf16.mxu0 0
      %1177 = vmatpush1.bf16.msra.mxu0 0
      %1178 = vmatprep.subr.bf16.mxu0 0
      %1179 = vmatpush1.bf16.msra.mxu0 0
      %1180 = vmatprep.subr.bf16.mxu0 0
      %1181 = vmatpush1.bf16.msra.mxu0 0
      %1182 = vmatprep.subr.bf16.mxu0 0
      %1183 = vmatpush1.bf16.msra.mxu0 0
      %1184 = vmatprep.subr.bf16.mxu0 0
      %1185 = vmatpush1.bf16.msra.mxu0 0
      %1186 = vmatprep.mubr.bf16.mxu0 0
      %1187 = vmatmul.mubr.bf16.gmra.mrb[0].mxu0 %v1140
      %v1188 = vpop.f32.mrb[0].mxu0
      %v1189 = vadd.f32 0.0, %v1188
      %v1190 = vpop.f32.mrb[0].mxu0
      %v1191 = vadd.f32 0.0, %v1190
      %v1192 = vpop.f32.mrb[0].mxu0
      %v1193 = vpop.f32.mrb[0].mxu0
      %1194 = vdwg.mxu0
      %1195 = vmatprep.subr.bf16.mxu0 %v1152
      %1196 = vmatpush1.bf16.msra.mxu0 %v1149
      %1197 = vmatprep.subr.bf16.mxu0 0
      %1198 = vmatpush1.bf16.msra.mxu0 0
      %1199 = vmatprep.subr.bf16.mxu0 0
      %1200 = vmatpush1.bf16.msra.mxu0 0
      %1201 = vmatprep.subr.bf16.mxu0 0
      %1202 = vmatpush1.bf16.msra.mxu0 0
      %1203 = vmatprep.subr.bf16.mxu0 0
      %1204 = vmatpush1.bf16.msra.mxu0 0
      %1205 = vmatprep.subr.bf16.mxu0 0
      %1206 = vmatpush1.bf16.msra.mxu0 0
      %1207 = vmatprep.subr.bf16.mxu0 0
      %1208 = vmatpush1.bf16.msra.mxu0 0
      %1209 = vmatprep.subr.bf16.mxu0 0
      %1210 = vmatpush1.bf16.msra.mxu0 0
      %1211 = vmatprep.subr.bf16.mxu0 0
      %1212 = vmatpush1.bf16.msra.mxu0 0
      %1213 = vmatprep.subr.bf16.mxu0 0
      %1214 = vmatpush1.bf16.msra.mxu0 0
      %1215 = vmatprep.subr.bf16.mxu0 0
      %1216 = vmatpush1.bf16.msra.mxu0 0
      %1217 = vmatprep.subr.bf16.mxu0 0
      %1218 = vmatpush1.bf16.msra.mxu0 0
      %1219 = vmatprep.subr.bf16.mxu0 0
      %1220 = vmatpush1.bf16.msra.mxu0 0
      %1221 = vmatprep.subr.bf16.mxu0 0
      %1222 = vmatpush1.bf16.msra.mxu0 0
      %1223 = vmatprep.subr.bf16.mxu0 0
      %1224 = vmatpush1.bf16.msra.mxu0 0
      %1225 = vmatprep.subr.bf16.mxu0 0
      %1226 = vmatpush1.bf16.msra.mxu0 0
      %1227 = vmatprep.mubr.bf16.mxu0 0
      %1228 = vmatmul.mubr.bf16.gmra.mrb[0].mxu0 %v1140
      %v1229 = vpop.f32.mrb[0].mxu0
      %v1230 = vadd.f32 0.0, %v1229
      %v1231 = vpop.f32.mrb[0].mxu0
      %v1232 = vadd.f32 0.0, %v1231
      %v1233 = vpop.f32.mrb[0].mxu0
      %v1234 = vpop.f32.mrb[0].mxu0
      %1235 = vdwg.mxu0
      %v1236 = vadd.f32 %v1120, %v1189
      %v1237 = vadd.f32 %v1121, %v1191
      %v1238 = vadd.f32 %v1122, %v1230
      %v1239 = vadd.f32 %v1123, %v1232
      %1240 = vrot.lane.b32.xlu0 %v313, 62
      %v1241 = vpop.permute.xlu0 %1240
      %1242 = vrot.lane.b32.xlu0 %v321, 62
      %v1243 = vpop.permute.xlu0 %1242
      %1244 = vrot.lane.b32.xlu0 %v320, 62
      %v1245 = vpop.permute.xlu0 %1244
      %1246 = vrot.lane.b32.xlu0 %v322, 62
      %v1247 = vpop.permute.xlu0 %1246
      %1248 = vrot.lane.b32.xlu0 %v304, 62
      %v1249 = vpop.permute.xlu0 %1248
      %vm1250 = vcmask 506880
      %v1251 = vsel %vm1250, %v1241, %v1243
      %v1252 = vsel %vm1250, %v1243, %v1245
      %v1253 = vsel %vm1250, %v1245, %v1247
      %v1254 = vsel %vm1250, %v1247, %v1249
      %v1256 = vsel %vm348, %v331, 0
      %v1259 = vsel %vm352, %v1251, 0
      %v1262 = vsel %vm352, %v1252, 0
      %v1265 = vsel %vm352, %v1253, 0
      %v1268 = vsel %vm352, %v1254, 0
      %1270 = vmatprep.subr.bf16.mxu0 %v1262
      %1271 = vmatpush1.bf16.msra.mxu0 %v1259
      %1272 = vmatprep.subr.bf16.mxu0 0
      %1273 = vmatpush1.bf16.msra.mxu0 0
      %1274 = vmatprep.subr.bf16.mxu0 0
      %1275 = vmatpush1.bf16.msra.mxu0 0
      %1276 = vmatprep.subr.bf16.mxu0 0
      %1277 = vmatpush1.bf16.msra.mxu0 0
      %1278 = vmatprep.subr.bf16.mxu0 0
      %1279 = vmatpush1.bf16.msra.mxu0 0
      %1280 = vmatprep.subr.bf16.mxu0 0
      %1281 = vmatpush1.bf16.msra.mxu0 0
      %1282 = vmatprep.subr.bf16.mxu0 0
      %1283 = vmatpush1.bf16.msra.mxu0 0
      %1284 = vmatprep.subr.bf16.mxu0 0
      %1285 = vmatpush1.bf16.msra.mxu0 0
      %1286 = vmatprep.subr.bf16.mxu0 0
      %1287 = vmatpush1.bf16.msra.mxu0 0
      %1288 = vmatprep.subr.bf16.mxu0 0
      %1289 = vmatpush1.bf16.msra.mxu0 0
      %1290 = vmatprep.subr.bf16.mxu0 0
      %1291 = vmatpush1.bf16.msra.mxu0 0
      %1292 = vmatprep.subr.bf16.mxu0 0
      %1293 = vmatpush1.bf16.msra.mxu0 0
      %1294 = vmatprep.subr.bf16.mxu0 0
      %1295 = vmatpush1.bf16.msra.mxu0 0
      %1296 = vmatprep.subr.bf16.mxu0 0
      %1297 = vmatpush1.bf16.msra.mxu0 0
      %1298 = vmatprep.subr.bf16.mxu0 0
      %1299 = vmatpush1.bf16.msra.mxu0 0
      %1300 = vmatprep.subr.bf16.mxu0 0
      %1301 = vmatpush1.bf16.msra.mxu0 0
      %1302 = vmatprep.mubr.bf16.mxu0 0
      %1303 = vmatmul.mubr.bf16.gmra.mrb[0].mxu0 %v1256
      %v1304 = vpop.f32.mrb[0].mxu0
      %v1305 = vadd.f32 0.0, %v1304
      %v1306 = vpop.f32.mrb[0].mxu0
      %v1307 = vadd.f32 0.0, %v1306
      %v1308 = vpop.f32.mrb[0].mxu0
      %v1309 = vpop.f32.mrb[0].mxu0
      %1310 = vdwg.mxu0
      %1311 = vmatprep.subr.bf16.mxu0 %v1268
      %1312 = vmatpush1.bf16.msra.mxu0 %v1265
      %1313 = vmatprep.subr.bf16.mxu0 0
      %1314 = vmatpush1.bf16.msra.mxu0 0
      %1315 = vmatprep.subr.bf16.mxu0 0
      %1316 = vmatpush1.bf16.msra.mxu0 0
      %1317 = vmatprep.subr.bf16.mxu0 0
      %1318 = vmatpush1.bf16.msra.mxu0 0
      %1319 = vmatprep.subr.bf16.mxu0 0
      %1320 = vmatpush1.bf16.msra.mxu0 0
      %1321 = vmatprep.subr.bf16.mxu0 0
      %1322 = vmatpush1.bf16.msra.mxu0 0
      %1323 = vmatprep.subr.bf16.mxu0 0
      %1324 = vmatpush1.bf16.msra.mxu0 0
      %1325 = vmatprep.subr.bf16.mxu0 0
      %1326 = vmatpush1.bf16.msra.mxu0 0
      %1327 = vmatprep.subr.bf16.mxu0 0
      %1328 = vmatpush1.bf16.msra.mxu0 0
      %1329 = vmatprep.subr.bf16.mxu0 0
      %1330 = vmatpush1.bf16.msra.mxu0 0
      %1331 = vmatprep.subr.bf16.mxu0 0
      %1332 = vmatpush1.bf16.msra.mxu0 0
      %1333 = vmatprep.subr.bf16.mxu0 0
      %1334 = vmatpush1.bf16.msra.mxu0 0
      %1335 = vmatprep.subr.bf16.mxu0 0
      %1336 = vmatpush1.bf16.msra.mxu0 0
      %1337 = vmatprep.subr.bf16.mxu0 0
      %1338 = vmatpush1.bf16.msra.mxu0 0
      %1339 = vmatprep.subr.bf16.mxu0 0
      %1340 = vmatpush1.bf16.msra.mxu0 0
      %1341 = vmatprep.subr.bf16.mxu0 0
      %1342 = vmatpush1.bf16.msra.mxu0 0
      %1343 = vmatprep.mubr.bf16.mxu0 0
      %1344 = vmatmul.mubr.bf16.gmra.mrb[0].mxu0 %v1256
      %v1345 = vpop.f32.mrb[0].mxu0
      %v1346 = vadd.f32 0.0, %v1345
      %v1347 = vpop.f32.mrb[0].mxu0
      %v1348 = vadd.f32 0.0, %v1347
      %v1349 = vpop.f32.mrb[0].mxu0
      %v1350 = vpop.f32.mrb[0].mxu0
      %1351 = vdwg.mxu0
      %v1352 = vadd.f32 %v1236, %v1305
      %v1353 = vadd.f32 %v1237, %v1307
      %v1354 = vadd.f32 %v1238, %v1346
      %v1355 = vadd.f32 %v1239, %v1348
      %v1356 = vld [vmem:[%s3] sm:$0xff]
      %1358 = vset.pattern.permute.xlu0 0
      %1359 = vperm.xlu0 %1358, %v1356
      %v1360 = vpop.permute.xlu0 %1359
      %v1362 = vadd.f32 %v1352, %v1360
      %v1363 = vadd.f32 %v1353, %v1360
      %v1364 = vadd.f32 %v1354, %v1360
      %v1365 = vadd.f32 %v1355, %v1360
      %1366 = vst [vmem:[%s300] sm:$0xff] %v1362
      %1367 = vst [vmem:[%s300 + $0x8] sm:$0xff] %v1363
      %1368 = vst [vmem:[%s300 + $0x10] sm:$0xff] %v1364
      %1369 = vst [vmem:[%s300 + $0x18] sm:$0xff] %v1365
      %s1370 = smul.u32 4, %s20
      %p1371 = scmp.lt.s32.totalorder %s19, 1
      %s1372 = scalar_select %p1371, %s19, 1
      %p1373 = scmp.lt.s32.totalorder %s1370, 7
      %s1374 = scalar_select %p1373, %s1370, 7
      %s1375 = smul.addr %s1372, 8
      %s1376 = sadd.s32 %s1374, %s1375
      %s1377 = smul.addr %s1376, 8
      %s1378 = scalar_lea.vmem %s4, %s1377
      // Predicated region
      $region37: #{upsample_conv_forward.1} parent=35 // pred_check
        %p1379 = pneg %p149
      $region38: #{upsample_conv_forward.1} parent=35 // pred_check_branch
        %1381 = sbr.rel (%p1379) target = $region40
      $region39: #{upsample_conv_forward.1} parent=35 // pred_region
        %s1382 = smul.u32 4, %s20
      $region40: #{upsample_conv_forward.1} parent=35 // pred_fallthru
        _
    $region36: #{upsample_conv_forward.1} parent=5 // pred_fallthru
      _
    %p1383 = scmp.le.s32.totalorder 2, %s10
    // Predicated region
    $region41: #{upsample_conv_forward.1} parent=5 // pred_check
      %p1384 = pneg %p1383
    $region42: #{upsample_conv_forward.1} parent=5 // pred_check_branch
      %1386 = sbr.rel (%p1384) target = $region44
    $region43: #{upsample_conv_forward.1} parent=5 // pred_region
      %s1387 = ssub.s32 %s10, 2
      // Predicated region
      $region45: #{upsample_conv_forward.1} parent=43 // pred_check
        %p1388 = pneg %p155
      $region46: #{upsample_conv_forward.1} parent=43 // pred_check_branch
        %1390 = sbr.rel (%p1388) target = $region48
      $region47: #{upsample_conv_forward.1} parent=43 // pred_region
        %s1391 = smul.u32 4, %s22
        %p1392 = scmp.lt.s32.totalorder %s21, 1
        %s1393 = scalar_select %p1392, %s21, 1
        %p1394 = scmp.lt.s32.totalorder %s1391, 7
        %s1395 = scalar_select %p1394, %s1391, 7
        %s1396 = smul.addr %s1393, 8
        %s1397 = sadd.s32 %s1395, %s1396
        %s1398 = smul.addr %s1397, 8
        %s1399 = scalar_lea.vmem %s4, %s1398
      $region48: #{upsample_conv_forward.1} parent=43 // pred_fallthru
        _
    $region44: #{upsample_conv_forward.1} parent=5 // pred_fallthru
      _
  $region6: #{upsample_conv_forward.1} parent=0 // loop_footer
    %s14 = sadd.s32 1, %s10
  $region7: #{upsample_conv_forward.1} parent=0 // loop_footer_branch
    %9 = sbr.rel target = $region3
  $region8: #{upsample_conv_forward.1} parent=0 // loop_exit
    _

</llo_original>
